<compile_context>
chip_gen: v7x
topology: tpu7x:2x2x1
jax: 0.10.0
libtpu: 0.0.40
codegen_flags: <defaults>
</compile_context>

<pallas_src>
import functools

import numpy as np
import jax
import jax.numpy as jnp
from jax.experimental import pallas as pl
from jax.experimental.pallas import tpu as pltpu


# --------------------------------------------------------------------------- kernel

def _attention_kernel(x_ref, wqkv_ref, bqkv_ref, wproj_ref, bproj_ref, o_ref,
                      dp_scr, wa_scr, *, bt, n_tokens, dims, n_heads, head_dims,
                      scale):
    """One grid step = `bt` batch samples presented as a flat (bt*T, D) slab."""
    T, D, H, Dh = n_tokens, dims, n_heads, head_dims
    BtT = bt * T

    x = x_ref[...]                                                     # (bt*T, D)

    # QKV projection: one lane-dense MXU matmul for the whole sample block.
    qkv = (jnp.dot(x, wqkv_ref[...], preferred_element_type=jnp.float32)
           + bqkv_ref[...])                                            # (bt*T, 3D)

    # torch layout of the qkv feature axis is [3, H, Dh]: q|k|v blocks of D,
    # head h at column offset h*Dh inside each block.  Extraction is hoisted so
    # each head slice is materialized exactly once per grid step.
    def head(which, h):
        col = which * D + h * Dh
        return qkv[:, col:col + Dh].reshape(bt, T, Dh)                 # (bt, T, Dh)

    q_heads = [head(0, h) for h in range(H)]
    k_heads = [head(1, h) for h in range(H)]
    v_heads = [head(2, h) for h in range(H)]

    # ---- pass 1: per-head scores + elementwise-power quirk, staged in VMEM scratch.
    for h in range(H):
        s = jnp.einsum('bqd,bkd->bqk', q_heads[h], k_heads[h],
                       preferred_element_type=jnp.float32)             # (bt, T, T)
        dp_scr[h] = jnp.power(s, scale).reshape(BtT, T)                # quirk: **scale

    # ---- pass 2: softmax over the HEADS axis (single reduction sweeps).
    dp = dp_scr[...]                                                   # (H, bt*T, T)
    m = jnp.max(dp, axis=0, keepdims=True)
    e = jnp.exp(dp - m)
    inv = pl.reciprocal(jnp.sum(e, axis=0, keepdims=True), approx=True)  # EUP slot
    attn = e * inv                                                     # (H, bt*T, T)

    # ---- pass 3: per-head PV, staged at static column offsets in a (bt*T, D)
    # scratch, then ONE fused K=D output-projection matmul and a single store.
    for h in range(H):
        wa = jnp.einsum('bqk,bkd->bqd', attn[h].reshape(bt, T, T), v_heads[h],
                        preferred_element_type=jnp.float32)            # (bt, T, Dh)
        wa_scr[:, h * Dh:(h + 1) * Dh] = wa.reshape(BtT, Dh)

    o_ref[...] = (jnp.dot(wa_scr[...], wproj_ref[...],
                          preferred_element_type=jnp.float32)
                  + bproj_ref[...]).astype(o_ref.dtype)


# --------------------------------------------------------------- VMEM / tile sizing

def _round_up(x, m):
    return ((x + m - 1) // m) * m


def _f32_tile_bytes(rows, cols):
    """f32 bytes of a (rows, cols) VMEM block after (8, 128) tile padding."""
    return 4 * _round_up(max(rows, 1), 8) * _round_up(max(cols, 1), 128)


def _weights_vmem_bytes(D):
    # Budgeted as DOUBLE-buffered so the no-Buffered(1) fallback path is covered.
    return 2 * (_f32_tile_bytes(D, 3 * D) + _f32_tile_bytes(1, 3 * D)
                + _f32_tile_bytes(D, D) + _f32_tile_bytes(1, D))


def _vmem_per_step_bytes(bt, T, D, H):
    BtT = bt * T
    xo_blocks = 2 * 2 * _f32_tile_bytes(BtT, D)        # double-buffered x & out blocks
    qkv_val   = 2 * _f32_tile_bytes(BtT, 3 * D)        # qkv value + head-slice temps
    scores    = 3 * H * _f32_tile_bytes(BtT, T)        # dp scratch + exp/attn values
    wa_stage  = _f32_tile_bytes(BtT, D)                # PV staging scratch
    misc      = 2 * _f32_tile_bytes(BtT, max(D, T))    # headroom for temporaries
    return xo_blocks + qkv_val + scores + wa_stage + misc


def _default_vmem_limit_bytes():
    """Generation-aware VMEM budget: ~100 MiB on 128 MiB parts, ~48 MiB on v7x."""
    cap = None
    try:
        cap = getattr(pltpu.get_tpu_info(), "vmem_capacity_bytes", None)
    except Exception:
        cap = None
    if not cap:
        return 48 * 1024 * 1024            # safe on every generation (incl. v7x 64 MiB)
    limit = min(int(cap) - 16 * 1024 * 1024, 100 * 1024 * 1024)
    return max(limit, 32 * 1024 * 1024)


def _pick_batch_tile(B, T, D, H, budget_bytes):
    """Largest per-step sample count Bt (divisor of B) within budget, keeping >=2
    grid steps so pipelining works and v7x's two TensorCores both get work."""
    avail = budget_bytes - _weights_vmem_bytes(D)
    cap = max(1, B // 2)
    best = None
    for bt in range(1, cap + 1):
        if B % bt != 0:
            continue
        # Block (bt*T, D) is legal if sublane-aligned or equal to the full extent.
        if (bt * T) % 8 != 0 and bt != B:
            continue
        if _vmem_per_step_bytes(bt, T, D, H) <= avail:
            best = bt
    if best is None:
        best = 1 if (T % 8 == 0 or B == 1) else B
    return best


# ------------------------------------------------------------------------- wrapper

def attention_forward(x, w_qkv, b_qkv, w_proj, b_proj, *, n_heads,
                      single_buffer_weights=True, vmem_limit_bytes=None):
    B, T, D = x.shape
    assert D % n_heads == 0
    Dh = D // n_heads
    scale = Dh ** (-0.5)

    if vmem_limit_bytes is None:
        vmem_limit_bytes = _default_vmem_limit_bytes()

    bt = _pick_batch_tile(B, T, D, n_heads,
                          budget_bytes=(3 * vmem_limit_bytes) // 4)
    grid = (B // bt,)
    BtT = bt * T

    kernel = functools.partial(_attention_kernel, bt=bt, n_tokens=T, dims=D,
                               n_heads=n_heads, head_dims=Dh, scale=scale)

    def weight_spec(shape):
        if single_buffer_weights:
            # Constant index_map -> fetched once, kept resident with a single buffer.
            return pl.BlockSpec(shape, lambda b: (0, 0), pipeline_mode=pl.Buffered(1))
        return pl.BlockSpec(shape, lambda b: (0, 0))

    out_flat = pl.pallas_call(
        kernel,
        out_shape=jax.ShapeDtypeStruct((B * T, D), x.dtype),
        grid_spec=pltpu.PrefetchScalarGridSpec(
            num_scalar_prefetch=0,
            grid=grid,
            in_specs=[
                pl.BlockSpec((BtT, D), lambda b: (b, 0)),              # x slab
                weight_spec((D, 3 * D)),                               # W_qkv
                weight_spec((1, 3 * D)),                               # b_qkv
                weight_spec((D, D)),                                   # W_proj
                weight_spec((1, D)),                                   # b_proj
            ],
            out_specs=pl.BlockSpec((BtT, D), lambda b: (b, 0)),
            scratch_shapes=[
                pltpu.VMEM((n_heads, BtT, T), jnp.float32),            # scores / exp
                pltpu.VMEM((BtT, D), jnp.float32),                     # PV staging
            ],
        ),
        compiler_params=pltpu.CompilerParams(
            dimension_semantics=("parallel",),
            vmem_limit_bytes=int(vmem_limit_bytes),
        ),
    )(x.reshape(B * T, D), w_qkv, b_qkv, w_proj, b_proj)

    return out_flat.reshape(B, T, D)


# ----------------------------------------------------------------------- reference

def attention_reference(x, w_qkv, b_qkv, w_proj, b_proj, *, n_heads):
    """Pure-JAX mirror of the PyTorch forward (with the same reproduced quirks)."""
    B, T, D = x.shape
    Dh = D // n_heads
    scale = Dh ** (-0.5)
    qkv = x @ w_qkv + b_qkv[0]                                    # (B, T, 3D)
    qkv = qkv.reshape(B, T, 3, n_heads, Dh).transpose(2, 0, 3, 1, 4)
    q, k, v = qkv[0], qkv[1], qkv[2]                              # (B, H, T, Dh)
    dp = jnp.power(jnp.einsum('bhqd,bhkd->bhqk', q, k), scale)    # power quirk
    m = jnp.max(dp, axis=1, keepdims=True)                        # softmax over heads
    e = jnp.exp(dp - m)
    attn = e / jnp.sum(e, axis=1, keepdims=True)
    w = jnp.einsum('bhqk,bhkd->bhqd', attn, v)
    w = w.transpose(0, 2, 1, 3).reshape(B, T, D)
    return w @ w_proj + b_proj[0]


if __name__ == "__main__":
    B, T, n_heads, head_dims = 2, 8, 4, 8
    D = n_heads * head_dims  # dims = 32

    key = jax.random.PRNGKey(0)
    kx, k1, k2, k3, k4 = jax.random.split(key, 5)
    # Positive inputs/weights keep (q @ k^T) > 0 so the module's elementwise
    # `** scale` quirk stays finite (negative bases give NaN, exactly as in torch).
    x = jax.random.uniform(kx, (B, T, D), dtype=jnp.float32)
    w_qkv = jax.random.uniform(k1, (D, 3 * D), dtype=jnp.float32) * 0.2
    b_qkv = jax.random.uniform(k2, (1, 3 * D), dtype=jnp.float32) * 0.1
    w_proj = jax.random.uniform(k3, (D, D), dtype=jnp.float32) * 0.2
    b_proj = jax.random.uniform(k4, (1, D), dtype=jnp.float32) * 0.1

    try:
        out = attention_forward(x, w_qkv, b_qkv, w_proj, b_proj, n_heads=n_heads)
    except Exception:
        # Fallback for jax builds where per-BlockSpec pipeline_mode is unsupported:
        # identical kernel, default (double) buffering for the weight operands
        # (already covered by the double-buffered weight VMEM budget).
        out = attention_forward(x, w_qkv, b_qkv, w_proj, b_proj, n_heads=n_heads,
                                single_buffer_weights=False)
    out = jax.block_until_ready(out)

    ref = attention_reference(x, w_qkv, b_qkv, w_proj, b_proj, n_heads=n_heads)
    # Tolerance loosened from 1e-5 only because of pl.reciprocal(approx=True);
    # all other math is exact f32.
    np.testing.assert_allclose(np.asarray(out), np.asarray(ref), rtol=1e-2, atol=1e-2)
    print("KERNEL_OK")
</pallas_src>

<mosaic_0001>
module attributes {stable_mosaic.version = 11 : i64} {
  func.func @_attention_kernel(%arg0: i32, %arg1: memref<8x32xf32, #tpu.memory_space<vmem>>, %arg2: memref<32x96xf32, #tpu.memory_space<vmem>>, %arg3: memref<1x96xf32, #tpu.memory_space<vmem>>, %arg4: memref<32x32xf32, #tpu.memory_space<vmem>>, %arg5: memref<1x32xf32, #tpu.memory_space<vmem>>, %arg6: memref<8x32xf32, #tpu.memory_space<vmem>>, %arg7: memref<4x8x8xf32, #tpu.memory_space<vmem>>, %arg8: memref<8x32xf32, #tpu.memory_space<vmem>>) attributes {dimension_semantics = [#tpu.dimension_semantics<parallel>], iteration_bounds = array<i64: 2>, scalar_prefetch = 0 : i64, scratch_operands = 2 : i64, tpu.core_type = #tpu.core_type<tc>, window_params = [{transform_indices = @transform_0, window_bounds = array<i64: 8, 32>}, {pipeline_mode = #tpu.pipeline_mode<synchronous>, transform_indices = @transform_1, window_bounds = array<i64: 32, 96>}, {pipeline_mode = #tpu.pipeline_mode<synchronous>, transform_indices = @transform_2, window_bounds = array<i64: 1, 96>}, {pipeline_mode = #tpu.pipeline_mode<synchronous>, transform_indices = @transform_3, window_bounds = array<i64: 32, 32>}, {pipeline_mode = #tpu.pipeline_mode<synchronous>, transform_indices = @transform_4, window_bounds = array<i64: 1, 32>}, {transform_indices = @transform_5, window_bounds = array<i64: 8, 32>}]} {
    %c0 = arith.constant 0 : index
    %c0_0 = arith.constant 0 : index
    %0 = vector.load %arg1[%c0, %c0_0] : memref<8x32xf32, #tpu.memory_space<vmem>>, vector<8x32xf32>
    %c0_1 = arith.constant 0 : index
    %c0_2 = arith.constant 0 : index
    %1 = vector.load %arg2[%c0_1, %c0_2] : memref<32x96xf32, #tpu.memory_space<vmem>>, vector<32x96xf32>
    %cst = arith.constant dense<0.000000e+00> : vector<8x96xf32>
    %2 = tpu.matmul %0, %1, %cst {dimension_numbers = #tpu.dot_dimension_numbers<[1], [0], [0], [1], [0, 0, 1, 1], [], []>} : vector<8x32xf32>, vector<32x96xf32>, vector<8x96xf32> -> vector<8x96xf32>
    %c0_3 = arith.constant 0 : index
    %c0_4 = arith.constant 0 : index
    %3 = vector.load %arg3[%c0_3, %c0_4] : memref<1x96xf32, #tpu.memory_space<vmem>>, vector<1x96xf32>
    %4 = vector.broadcast %3 : vector<1x96xf32> to vector<8x96xf32>
    %5 = arith.addf %2, %4 : vector<8x96xf32>
    %6 = vector.extract_strided_slice %5 {offsets = [0, 0], sizes = [8, 8], strides = [1, 1]} : vector<8x96xf32> to vector<8x8xf32>
    %7 = vector.shape_cast %6 : vector<8x8xf32> to vector<1x8x8xf32>
    %8 = vector.extract_strided_slice %5 {offsets = [0, 8], sizes = [8, 8], strides = [1, 1]} : vector<8x96xf32> to vector<8x8xf32>
    %9 = vector.shape_cast %8 : vector<8x8xf32> to vector<1x8x8xf32>
    %10 = vector.extract_strided_slice %5 {offsets = [0, 16], sizes = [8, 8], strides = [1, 1]} : vector<8x96xf32> to vector<8x8xf32>
    %11 = vector.shape_cast %10 : vector<8x8xf32> to vector<1x8x8xf32>
    %12 = vector.extract_strided_slice %5 {offsets = [0, 24], sizes = [8, 8], strides = [1, 1]} : vector<8x96xf32> to vector<8x8xf32>
    %13 = vector.shape_cast %12 : vector<8x8xf32> to vector<1x8x8xf32>
    %14 = vector.extract_strided_slice %5 {offsets = [0, 32], sizes = [8, 8], strides = [1, 1]} : vector<8x96xf32> to vector<8x8xf32>
    %15 = vector.shape_cast %14 : vector<8x8xf32> to vector<1x8x8xf32>
    %16 = vector.extract_strided_slice %5 {offsets = [0, 40], sizes = [8, 8], strides = [1, 1]} : vector<8x96xf32> to vector<8x8xf32>
    %17 = vector.shape_cast %16 : vector<8x8xf32> to vector<1x8x8xf32>
    %18 = vector.extract_strided_slice %5 {offsets = [0, 48], sizes = [8, 8], strides = [1, 1]} : vector<8x96xf32> to vector<8x8xf32>
    %19 = vector.shape_cast %18 : vector<8x8xf32> to vector<1x8x8xf32>
    %20 = vector.extract_strided_slice %5 {offsets = [0, 56], sizes = [8, 8], strides = [1, 1]} : vector<8x96xf32> to vector<8x8xf32>
    %21 = vector.shape_cast %20 : vector<8x8xf32> to vector<1x8x8xf32>
    %22 = vector.extract_strided_slice %5 {offsets = [0, 64], sizes = [8, 8], strides = [1, 1]} : vector<8x96xf32> to vector<8x8xf32>
    %23 = vector.shape_cast %22 : vector<8x8xf32> to vector<1x8x8xf32>
    %24 = vector.extract_strided_slice %5 {offsets = [0, 72], sizes = [8, 8], strides = [1, 1]} : vector<8x96xf32> to vector<8x8xf32>
    %25 = vector.shape_cast %24 : vector<8x8xf32> to vector<1x8x8xf32>
    %26 = vector.extract_strided_slice %5 {offsets = [0, 80], sizes = [8, 8], strides = [1, 1]} : vector<8x96xf32> to vector<8x8xf32>
    %27 = vector.shape_cast %26 : vector<8x8xf32> to vector<1x8x8xf32>
    %28 = vector.extract_strided_slice %5 {offsets = [0, 88], sizes = [8, 8], strides = [1, 1]} : vector<8x96xf32> to vector<8x8xf32>
    %29 = vector.shape_cast %28 : vector<8x8xf32> to vector<1x8x8xf32>
    "tpu.trace_start"() <{level = 10 : i32, message = "bqd,bkd->bqk"}> : () -> ()
    %cst_5 = arith.constant dense<0.000000e+00> : vector<1x8x8xf32>
    %30 = tpu.matmul %7, %15, %cst_5 {dimension_numbers = #tpu.dot_dimension_numbers<[2], [2], [1], [1], [0, 0, 0, 1, 1, 1], [0], [0]>} : vector<1x8x8xf32>, vector<1x8x8xf32>, vector<1x8x8xf32> -> vector<1x8x8xf32>
    "tpu.trace_stop"() : () -> ()
    %cst_6 = arith.constant 0.353553385 : f32
    %31 = vector.broadcast %cst_6 : f32 to vector<1x8x8xf32>
    %32 = math.powf %30, %31 : vector<1x8x8xf32>
    %33 = vector.shape_cast %32 : vector<1x8x8xf32> to vector<8x8xf32>
    %c0_7 = arith.constant 0 : index
    %c0_8 = arith.constant 0 : index
    %c0_9 = arith.constant 0 : index
    %34 = vector.load %arg7[%c0_7, %c0_8, %c0_9] : memref<4x8x8xf32, #tpu.memory_space<vmem>>, vector<1x8x8xf32>
    %35 = vector.shape_cast %34 : vector<1x8x8xf32> to vector<8x8xf32>
    %36 = vector.shape_cast %33 : vector<8x8xf32> to vector<1x8x8xf32>
    tpu.vector_store %arg7[%c0_7, %c0_8, %c0_9], %36 {strides = array<i32>} : memref<4x8x8xf32, #tpu.memory_space<vmem>>, vector<1x8x8xf32>,
    "tpu.trace_start"() <{level = 10 : i32, message = "bqd,bkd->bqk"}> : () -> ()
    %cst_10 = arith.constant dense<0.000000e+00> : vector<1x8x8xf32>
    %37 = tpu.matmul %9, %17, %cst_10 {dimension_numbers = #tpu.dot_dimension_numbers<[2], [2], [1], [1], [0, 0, 0, 1, 1, 1], [0], [0]>} : vector<1x8x8xf32>, vector<1x8x8xf32>, vector<1x8x8xf32> -> vector<1x8x8xf32>
    "tpu.trace_stop"() : () -> ()
    %cst_11 = arith.constant 0.353553385 : f32
    %38 = vector.broadcast %cst_11 : f32 to vector<1x8x8xf32>
    %39 = math.powf %37, %38 : vector<1x8x8xf32>
    %40 = vector.shape_cast %39 : vector<1x8x8xf32> to vector<8x8xf32>
    %c1 = arith.constant 1 : index
    %c0_12 = arith.constant 0 : index
    %c0_13 = arith.constant 0 : index
    %41 = vector.load %arg7[%c1, %c0_12, %c0_13] : memref<4x8x8xf32, #tpu.memory_space<vmem>>, vector<1x8x8xf32>
    %42 = vector.shape_cast %41 : vector<1x8x8xf32> to vector<8x8xf32>
    %43 = vector.shape_cast %40 : vector<8x8xf32> to vector<1x8x8xf32>
    tpu.vector_store %arg7[%c1, %c0_12, %c0_13], %43 {strides = array<i32>} : memref<4x8x8xf32, #tpu.memory_space<vmem>>, vector<1x8x8xf32>,
    "tpu.trace_start"() <{level = 10 : i32, message = "bqd,bkd->bqk"}> : () -> ()
    %cst_14 = arith.constant dense<0.000000e+00> : vector<1x8x8xf32>
    %44 = tpu.matmul %11, %19, %cst_14 {dimension_numbers = #tpu.dot_dimension_numbers<[2], [2], [1], [1], [0, 0, 0, 1, 1, 1], [0], [0]>} : vector<1x8x8xf32>, vector<1x8x8xf32>, vector<1x8x8xf32> -> vector<1x8x8xf32>
    "tpu.trace_stop"() : () -> ()
    %cst_15 = arith.constant 0.353553385 : f32
    %45 = vector.broadcast %cst_15 : f32 to vector<1x8x8xf32>
    %46 = math.powf %44, %45 : vector<1x8x8xf32>
    %47 = vector.shape_cast %46 : vector<1x8x8xf32> to vector<8x8xf32>
    %c2 = arith.constant 2 : index
    %c0_16 = arith.constant 0 : index
    %c0_17 = arith.constant 0 : index
    %48 = vector.load %arg7[%c2, %c0_16, %c0_17] : memref<4x8x8xf32, #tpu.memory_space<vmem>>, vector<1x8x8xf32>
    %49 = vector.shape_cast %48 : vector<1x8x8xf32> to vector<8x8xf32>
    %50 = vector.shape_cast %47 : vector<8x8xf32> to vector<1x8x8xf32>
    tpu.vector_store %arg7[%c2, %c0_16, %c0_17], %50 {strides = array<i32>} : memref<4x8x8xf32, #tpu.memory_space<vmem>>, vector<1x8x8xf32>,
    "tpu.trace_start"() <{level = 10 : i32, message = "bqd,bkd->bqk"}> : () -> ()
    %cst_18 = arith.constant dense<0.000000e+00> : vector<1x8x8xf32>
    %51 = tpu.matmul %13, %21, %cst_18 {dimension_numbers = #tpu.dot_dimension_numbers<[2], [2], [1], [1], [0, 0, 0, 1, 1, 1], [0], [0]>} : vector<1x8x8xf32>, vector<1x8x8xf32>, vector<1x8x8xf32> -> vector<1x8x8xf32>
    "tpu.trace_stop"() : () -> ()
    %cst_19 = arith.constant 0.353553385 : f32
    %52 = vector.broadcast %cst_19 : f32 to vector<1x8x8xf32>
    %53 = math.powf %51, %52 : vector<1x8x8xf32>
    %54 = vector.shape_cast %53 : vector<1x8x8xf32> to vector<8x8xf32>
    %c3 = arith.constant 3 : index
    %c0_20 = arith.constant 0 : index
    %c0_21 = arith.constant 0 : index
    %55 = vector.load %arg7[%c3, %c0_20, %c0_21] : memref<4x8x8xf32, #tpu.memory_space<vmem>>, vector<1x8x8xf32>
    %56 = vector.shape_cast %55 : vector<1x8x8xf32> to vector<8x8xf32>
    %57 = vector.shape_cast %54 : vector<8x8xf32> to vector<1x8x8xf32>
    tpu.vector_store %arg7[%c3, %c0_20, %c0_21], %57 {strides = array<i32>} : memref<4x8x8xf32, #tpu.memory_space<vmem>>, vector<1x8x8xf32>,
    %c0_22 = arith.constant 0 : index
    %c0_23 = arith.constant 0 : index
    %c0_24 = arith.constant 0 : index
    %58 = vector.load %arg7[%c0_22, %c0_23, %c0_24] : memref<4x8x8xf32, #tpu.memory_space<vmem>>, vector<4x8x8xf32>
    %cst_25 = arith.constant dense<0xFF800000> : vector<8x8xf32>
    %59 = vector.multi_reduction <maximumf>, %58, %cst_25 [0] : vector<4x8x8xf32> to vector<8x8xf32>
    %60 = vector.shape_cast %59 : vector<8x8xf32> to vector<1x8x8xf32>
    %61 = vector.broadcast %60 : vector<1x8x8xf32> to vector<4x8x8xf32>
    %62 = arith.subf %58, %61 : vector<4x8x8xf32>
    %63 = math.exp %62 : vector<4x8x8xf32>
    %cst_26 = arith.constant dense<0.000000e+00> : vector<8x8xf32>
    %64 = vector.multi_reduction <add>, %63, %cst_26 [0] : vector<4x8x8xf32> to vector<8x8xf32>
    %65 = vector.shape_cast %64 : vector<8x8xf32> to vector<1x8x8xf32>
    %66 = tpu.reciprocal %65 {approx = true} : vector<1x8x8xf32> -> vector<1x8x8xf32>
    %67 = vector.broadcast %66 : vector<1x8x8xf32> to vector<4x8x8xf32>
    %68 = arith.mulf %63, %67 : vector<4x8x8xf32>
    %69 = vector.extract_strided_slice %68 {offsets = [0, 0, 0], sizes = [1, 8, 8], strides = [1, 1, 1]} : vector<4x8x8xf32> to vector<1x8x8xf32>
    %70 = vector.shape_cast %69 : vector<1x8x8xf32> to vector<8x8xf32>
    %71 = vector.shape_cast %70 : vector<8x8xf32> to vector<1x8x8xf32>
    "tpu.trace_start"() <{level = 10 : i32, message = "bqk,bkd->bqd"}> : () -> ()
    %cst_27 = arith.constant dense<0.000000e+00> : vector<1x8x8xf32>
    %72 = tpu.matmul %71, %23, %cst_27 {dimension_numbers = #tpu.dot_dimension_numbers<[2], [1], [1], [2], [0, 0, 0, 1, 1, 2], [0], [0]>} : vector<1x8x8xf32>, vector<1x8x8xf32>, vector<1x8x8xf32> -> vector<1x8x8xf32>
    "tpu.trace_stop"() : () -> ()
    %73 = vector.shape_cast %72 : vector<1x8x8xf32> to vector<8x8xf32>
    %c0_28 = arith.constant 0 : index
    %c0_29 = arith.constant 0 : index
    %74 = vector.load %arg8[%c0_28, %c0_29] : memref<8x32xf32, #tpu.memory_space<vmem>>, vector<8x8xf32>
    tpu.vector_store %arg8[%c0_28, %c0_29], %73 {strides = array<i32>} : memref<8x32xf32, #tpu.memory_space<vmem>>, vector<8x8xf32>,
    %75 = vector.extract_strided_slice %68 {offsets = [1, 0, 0], sizes = [1, 8, 8], strides = [1, 1, 1]} : vector<4x8x8xf32> to vector<1x8x8xf32>
    %76 = vector.shape_cast %75 : vector<1x8x8xf32> to vector<8x8xf32>
    %77 = vector.shape_cast %76 : vector<8x8xf32> to vector<1x8x8xf32>
    "tpu.trace_start"() <{level = 10 : i32, message = "bqk,bkd->bqd"}> : () -> ()
    %cst_30 = arith.constant dense<0.000000e+00> : vector<1x8x8xf32>
    %78 = tpu.matmul %77, %25, %cst_30 {dimension_numbers = #tpu.dot_dimension_numbers<[2], [1], [1], [2], [0, 0, 0, 1, 1, 2], [0], [0]>} : vector<1x8x8xf32>, vector<1x8x8xf32>, vector<1x8x8xf32> -> vector<1x8x8xf32>
    "tpu.trace_stop"() : () -> ()
    %79 = vector.shape_cast %78 : vector<1x8x8xf32> to vector<8x8xf32>
    %c0_31 = arith.constant 0 : index
    %c8 = arith.constant 8 : index
    %80 = vector.load %arg8[%c0_31, %c8] : memref<8x32xf32, #tpu.memory_space<vmem>>, vector<8x8xf32>
    tpu.vector_store %arg8[%c0_31, %c8], %79 {strides = array<i32>} : memref<8x32xf32, #tpu.memory_space<vmem>>, vector<8x8xf32>,
    %81 = vector.extract_strided_slice %68 {offsets = [2, 0, 0], sizes = [1, 8, 8], strides = [1, 1, 1]} : vector<4x8x8xf32> to vector<1x8x8xf32>
    %82 = vector.shape_cast %81 : vector<1x8x8xf32> to vector<8x8xf32>
    %83 = vector.shape_cast %82 : vector<8x8xf32> to vector<1x8x8xf32>
    "tpu.trace_start"() <{level = 10 : i32, message = "bqk,bkd->bqd"}> : () -> ()
    %cst_32 = arith.constant dense<0.000000e+00> : vector<1x8x8xf32>
    %84 = tpu.matmul %83, %27, %cst_32 {dimension_numbers = #tpu.dot_dimension_numbers<[2], [1], [1], [2], [0, 0, 0, 1, 1, 2], [0], [0]>} : vector<1x8x8xf32>, vector<1x8x8xf32>, vector<1x8x8xf32> -> vector<1x8x8xf32>
    "tpu.trace_stop"() : () -> ()
    %85 = vector.shape_cast %84 : vector<1x8x8xf32> to vector<8x8xf32>
    %c0_33 = arith.constant 0 : index
    %c16 = arith.constant 16 : index
    %86 = vector.load %arg8[%c0_33, %c16] : memref<8x32xf32, #tpu.memory_space<vmem>>, vector<8x8xf32>
    tpu.vector_store %arg8[%c0_33, %c16], %85 {strides = array<i32>} : memref<8x32xf32, #tpu.memory_space<vmem>>, vector<8x8xf32>,
    %87 = vector.extract_strided_slice %68 {offsets = [3, 0, 0], sizes = [1, 8, 8], strides = [1, 1, 1]} : vector<4x8x8xf32> to vector<1x8x8xf32>
    %88 = vector.shape_cast %87 : vector<1x8x8xf32> to vector<8x8xf32>
    %89 = vector.shape_cast %88 : vector<8x8xf32> to vector<1x8x8xf32>
    "tpu.trace_start"() <{level = 10 : i32, message = "bqk,bkd->bqd"}> : () -> ()
    %cst_34 = arith.constant dense<0.000000e+00> : vector<1x8x8xf32>
    %90 = tpu.matmul %89, %29, %cst_34 {dimension_numbers = #tpu.dot_dimension_numbers<[2], [1], [1], [2], [0, 0, 0, 1, 1, 2], [0], [0]>} : vector<1x8x8xf32>, vector<1x8x8xf32>, vector<1x8x8xf32> -> vector<1x8x8xf32>
    "tpu.trace_stop"() : () -> ()
    %91 = vector.shape_cast %90 : vector<1x8x8xf32> to vector<8x8xf32>
    %c0_35 = arith.constant 0 : index
    %c24 = arith.constant 24 : index
    %92 = vector.load %arg8[%c0_35, %c24] : memref<8x32xf32, #tpu.memory_space<vmem>>, vector<8x8xf32>
    tpu.vector_store %arg8[%c0_35, %c24], %91 {strides = array<i32>} : memref<8x32xf32, #tpu.memory_space<vmem>>, vector<8x8xf32>,
    %c0_36 = arith.constant 0 : index
    %c0_37 = arith.constant 0 : index
    %93 = vector.load %arg8[%c0_36, %c0_37] : memref<8x32xf32, #tpu.memory_space<vmem>>, vector<8x32xf32>
    %c0_38 = arith.constant 0 : index
    %c0_39 = arith.constant 0 : index
    %94 = vector.load %arg4[%c0_38, %c0_39] : memref<32x32xf32, #tpu.memory_space<vmem>>, vector<32x32xf32>
    %cst_40 = arith.constant dense<0.000000e+00> : vector<8x32xf32>
    %95 = tpu.matmul %93, %94, %cst_40 {dimension_numbers = #tpu.dot_dimension_numbers<[1], [0], [0], [1], [0, 0, 1, 1], [], []>} : vector<8x32xf32>, vector<32x32xf32>, vector<8x32xf32> -> vector<8x32xf32>
    %c0_41 = arith.constant 0 : index
    %c0_42 = arith.constant 0 : index
    %96 = vector.load %arg5[%c0_41, %c0_42] : memref<1x32xf32, #tpu.memory_space<vmem>>, vector<1x32xf32>
    %97 = vector.broadcast %96 : vector<1x32xf32> to vector<8x32xf32>
    %98 = arith.addf %95, %97 : vector<8x32xf32>
    %c0_43 = arith.constant 0 : index
    %c0_44 = arith.constant 0 : index
    %99 = vector.load %arg6[%c0_43, %c0_44] : memref<8x32xf32, #tpu.memory_space<vmem>>, vector<8x32xf32>
    tpu.vector_store %arg6[%c0_43, %c0_44], %98 {strides = array<i32>} : memref<8x32xf32, #tpu.memory_space<vmem>>, vector<8x32xf32>,
    return
  }
  func.func @transform_0(%arg0: i32) -> (i32, i32) {
    %c0_i32 = arith.constant 0 : i32
    %c0_i32_0 = arith.constant 0 : i32
    return %arg0, %c0_i32 : i32, i32
  }
  func.func @transform_1(%arg0: i32) -> (i32, i32) {
    %c0_i32 = arith.constant 0 : i32
    %c0_i32_0 = arith.constant 0 : i32
    %c0_i32_1 = arith.constant 0 : i32
    return %c0_i32, %c0_i32_0 : i32, i32
  }
  func.func @transform_2(%arg0: i32) -> (i32, i32) {
    %c0_i32 = arith.constant 0 : i32
    %c0_i32_0 = arith.constant 0 : i32
    %c0_i32_1 = arith.constant 0 : i32
    return %c0_i32, %c0_i32_0 : i32, i32
  }
  func.func @transform_3(%arg0: i32) -> (i32, i32) {
    %c0_i32 = arith.constant 0 : i32
    %c0_i32_0 = arith.constant 0 : i32
    %c0_i32_1 = arith.constant 0 : i32
    return %c0_i32, %c0_i32_0 : i32, i32
  }
  func.func @transform_4(%arg0: i32) -> (i32, i32) {
    %c0_i32 = arith.constant 0 : i32
    %c0_i32_0 = arith.constant 0 : i32
    %c0_i32_1 = arith.constant 0 : i32
    return %c0_i32, %c0_i32_0 : i32, i32
  }
  func.func @transform_5(%arg0: i32) -> (i32, i32) {
    %c0_i32 = arith.constant 0 : i32
    %c0_i32_0 = arith.constant 0 : i32
    return %arg0, %c0_i32 : i32, i32
  }
}

module attributes {stable_mosaic.version = 11 : i64} {
  func.func @_attention_kernel(%arg0: i32, %arg1: memref<8x32xf32, #tpu.memory_space<vmem>>, %arg2: memref<32x96xf32, #tpu.memory_space<vmem>>, %arg3: memref<1x96xf32, #tpu.memory_space<vmem>>, %arg4: memref<32x32xf32, #tpu.memory_space<vmem>>, %arg5: memref<1x32xf32, #tpu.memory_space<vmem>>, %arg6: memref<8x32xf32, #tpu.memory_space<vmem>>, %arg7: memref<4x8x8xf32, #tpu.memory_space<vmem>>, %arg8: memref<8x32xf32, #tpu.memory_space<vmem>>) attributes {dimension_semantics = [#tpu.dimension_semantics<parallel>], iteration_bounds = array<i64: 2>, scalar_prefetch = 0 : i64, scratch_operands = 2 : i64, tpu.core_type = #tpu.core_type<tc>, window_params = [{transform_indices = @transform_0, window_bounds = array<i64: 8, 32>}, {pipeline_mode = #tpu.pipeline_mode<synchronous>, transform_indices = @transform_1, window_bounds = array<i64: 32, 96>}, {pipeline_mode = #tpu.pipeline_mode<synchronous>, transform_indices = @transform_2, window_bounds = array<i64: 1, 96>}, {pipeline_mode = #tpu.pipeline_mode<synchronous>, transform_indices = @transform_3, window_bounds = array<i64: 32, 32>}, {pipeline_mode = #tpu.pipeline_mode<synchronous>, transform_indices = @transform_4, window_bounds = array<i64: 1, 32>}, {transform_indices = @transform_5, window_bounds = array<i64: 8, 32>}]} {
    %c0 = arith.constant 0 : index
    %c0_0 = arith.constant 0 : index
    %0 = vector.load %arg1[%c0, %c0_0] : memref<8x32xf32, #tpu.memory_space<vmem>>, vector<8x32xf32>
    %c0_1 = arith.constant 0 : index
    %c0_2 = arith.constant 0 : index
    %1 = vector.load %arg2[%c0_1, %c0_2] : memref<32x96xf32, #tpu.memory_space<vmem>>, vector<32x96xf32>
    %cst = arith.constant dense<0.000000e+00> : vector<8x96xf32>
    %2 = tpu.matmul %0, %1, %cst {dimension_numbers = #tpu.dot_dimension_numbers<[1], [0], [0], [1], [0, 0, 1, 1], [], []>} : vector<8x32xf32>, vector<32x96xf32>, vector<8x96xf32> -> vector<8x96xf32>
    %c0_3 = arith.constant 0 : index
    %c0_4 = arith.constant 0 : index
    %3 = vector.load %arg3[%c0_3, %c0_4] : memref<1x96xf32, #tpu.memory_space<vmem>>, vector<1x96xf32>
    %4 = vector.broadcast %3 : vector<1x96xf32> to vector<8x96xf32>
    %5 = arith.addf %2, %4 : vector<8x96xf32>
    %6 = vector.extract_strided_slice %5 {offsets = [0, 0], sizes = [8, 8], strides = [1, 1]} : vector<8x96xf32> to vector<8x8xf32>
    %7 = vector.shape_cast %6 : vector<8x8xf32> to vector<1x8x8xf32>
    %8 = vector.extract_strided_slice %5 {offsets = [0, 8], sizes = [8, 8], strides = [1, 1]} : vector<8x96xf32> to vector<8x8xf32>
    %9 = vector.shape_cast %8 : vector<8x8xf32> to vector<1x8x8xf32>
    %10 = vector.extract_strided_slice %5 {offsets = [0, 16], sizes = [8, 8], strides = [1, 1]} : vector<8x96xf32> to vector<8x8xf32>
    %11 = vector.shape_cast %10 : vector<8x8xf32> to vector<1x8x8xf32>
    %12 = vector.extract_strided_slice %5 {offsets = [0, 24], sizes = [8, 8], strides = [1, 1]} : vector<8x96xf32> to vector<8x8xf32>
    %13 = vector.shape_cast %12 : vector<8x8xf32> to vector<1x8x8xf32>
    %14 = vector.extract_strided_slice %5 {offsets = [0, 32], sizes = [8, 8], strides = [1, 1]} : vector<8x96xf32> to vector<8x8xf32>
    %15 = vector.shape_cast %14 : vector<8x8xf32> to vector<1x8x8xf32>
    %16 = vector.extract_strided_slice %5 {offsets = [0, 40], sizes = [8, 8], strides = [1, 1]} : vector<8x96xf32> to vector<8x8xf32>
    %17 = vector.shape_cast %16 : vector<8x8xf32> to vector<1x8x8xf32>
    %18 = vector.extract_strided_slice %5 {offsets = [0, 48], sizes = [8, 8], strides = [1, 1]} : vector<8x96xf32> to vector<8x8xf32>
    %19 = vector.shape_cast %18 : vector<8x8xf32> to vector<1x8x8xf32>
    %20 = vector.extract_strided_slice %5 {offsets = [0, 56], sizes = [8, 8], strides = [1, 1]} : vector<8x96xf32> to vector<8x8xf32>
    %21 = vector.shape_cast %20 : vector<8x8xf32> to vector<1x8x8xf32>
    %22 = vector.extract_strided_slice %5 {offsets = [0, 64], sizes = [8, 8], strides = [1, 1]} : vector<8x96xf32> to vector<8x8xf32>
    %23 = vector.shape_cast %22 : vector<8x8xf32> to vector<1x8x8xf32>
    %24 = vector.extract_strided_slice %5 {offsets = [0, 72], sizes = [8, 8], strides = [1, 1]} : vector<8x96xf32> to vector<8x8xf32>
    %25 = vector.shape_cast %24 : vector<8x8xf32> to vector<1x8x8xf32>
    %26 = vector.extract_strided_slice %5 {offsets = [0, 80], sizes = [8, 8], strides = [1, 1]} : vector<8x96xf32> to vector<8x8xf32>
    %27 = vector.shape_cast %26 : vector<8x8xf32> to vector<1x8x8xf32>
    %28 = vector.extract_strided_slice %5 {offsets = [0, 88], sizes = [8, 8], strides = [1, 1]} : vector<8x96xf32> to vector<8x8xf32>
    %29 = vector.shape_cast %28 : vector<8x8xf32> to vector<1x8x8xf32>
    "tpu.trace_start"() <{level = 10 : i32, message = "bqd,bkd->bqk"}> : () -> ()
    %cst_5 = arith.constant dense<0.000000e+00> : vector<1x8x8xf32>
    %30 = tpu.matmul %7, %15, %cst_5 {dimension_numbers = #tpu.dot_dimension_numbers<[2], [2], [1], [1], [0, 0, 0, 1, 1, 1], [0], [0]>} : vector<1x8x8xf32>, vector<1x8x8xf32>, vector<1x8x8xf32> -> vector<1x8x8xf32>
    "tpu.trace_stop"() : () -> ()
    %cst_6 = arith.constant 0.353553385 : f32
    %31 = vector.broadcast %cst_6 : f32 to vector<1x8x8xf32>
    %32 = math.powf %30, %31 : vector<1x8x8xf32>
    %33 = vector.shape_cast %32 : vector<1x8x8xf32> to vector<8x8xf32>
    %c0_7 = arith.constant 0 : index
    %c0_8 = arith.constant 0 : index
    %c0_9 = arith.constant 0 : index
    %34 = vector.load %arg7[%c0_7, %c0_8, %c0_9] : memref<4x8x8xf32, #tpu.memory_space<vmem>>, vector<1x8x8xf32>
    %35 = vector.shape_cast %34 : vector<1x8x8xf32> to vector<8x8xf32>
    %36 = vector.shape_cast %33 : vector<8x8xf32> to vector<1x8x8xf32>
    tpu.vector_store %arg7[%c0_7, %c0_8, %c0_9], %36 {strides = array<i32>} : memref<4x8x8xf32, #tpu.memory_space<vmem>>, vector<1x8x8xf32>,
    "tpu.trace_start"() <{level = 10 : i32, message = "bqd,bkd->bqk"}> : () -> ()
    %cst_10 = arith.constant dense<0.000000e+00> : vector<1x8x8xf32>
    %37 = tpu.matmul %9, %17, %cst_10 {dimension_numbers = #tpu.dot_dimension_numbers<[2], [2], [1], [1], [0, 0, 0, 1, 1, 1], [0], [0]>} : vector<1x8x8xf32>, vector<1x8x8xf32>, vector<1x8x8xf32> -> vector<1x8x8xf32>
    "tpu.trace_stop"() : () -> ()
    %cst_11 = arith.constant 0.353553385 : f32
    %38 = vector.broadcast %cst_11 : f32 to vector<1x8x8xf32>
    %39 = math.powf %37, %38 : vector<1x8x8xf32>
    %40 = vector.shape_cast %39 : vector<1x8x8xf32> to vector<8x8xf32>
    %c1 = arith.constant 1 : index
    %c0_12 = arith.constant 0 : index
    %c0_13 = arith.constant 0 : index
    %41 = vector.load %arg7[%c1, %c0_12, %c0_13] : memref<4x8x8xf32, #tpu.memory_space<vmem>>, vector<1x8x8xf32>
    %42 = vector.shape_cast %41 : vector<1x8x8xf32> to vector<8x8xf32>
    %43 = vector.shape_cast %40 : vector<8x8xf32> to vector<1x8x8xf32>
    tpu.vector_store %arg7[%c1, %c0_12, %c0_13], %43 {strides = array<i32>} : memref<4x8x8xf32, #tpu.memory_space<vmem>>, vector<1x8x8xf32>,
    "tpu.trace_start"() <{level = 10 : i32, message = "bqd,bkd->bqk"}> : () -> ()
    %cst_14 = arith.constant dense<0.000000e+00> : vector<1x8x8xf32>
    %44 = tpu.matmul %11, %19, %cst_14 {dimension_numbers = #tpu.dot_dimension_numbers<[2], [2], [1], [1], [0, 0, 0, 1, 1, 1], [0], [0]>} : vector<1x8x8xf32>, vector<1x8x8xf32>, vector<1x8x8xf32> -> vector<1x8x8xf32>
    "tpu.trace_stop"() : () -> ()
    %cst_15 = arith.constant 0.353553385 : f32
    %45 = vector.broadcast %cst_15 : f32 to vector<1x8x8xf32>
    %46 = math.powf %44, %45 : vector<1x8x8xf32>
    %47 = vector.shape_cast %46 : vector<1x8x8xf32> to vector<8x8xf32>
    %c2 = arith.constant 2 : index
    %c0_16 = arith.constant 0 : index
    %c0_17 = arith.constant 0 : index
    %48 = vector.load %arg7[%c2, %c0_16, %c0_17] : memref<4x8x8xf32, #tpu.memory_space<vmem>>, vector<1x8x8xf32>
    %49 = vector.shape_cast %48 : vector<1x8x8xf32> to vector<8x8xf32>
    %50 = vector.shape_cast %47 : vector<8x8xf32> to vector<1x8x8xf32>
    tpu.vector_store %arg7[%c2, %c0_16, %c0_17], %50 {strides = array<i32>} : memref<4x8x8xf32, #tpu.memory_space<vmem>>, vector<1x8x8xf32>,
    "tpu.trace_start"() <{level = 10 : i32, message = "bqd,bkd->bqk"}> : () -> ()
    %cst_18 = arith.constant dense<0.000000e+00> : vector<1x8x8xf32>
    %51 = tpu.matmul %13, %21, %cst_18 {dimension_numbers = #tpu.dot_dimension_numbers<[2], [2], [1], [1], [0, 0, 0, 1, 1, 1], [0], [0]>} : vector<1x8x8xf32>, vector<1x8x8xf32>, vector<1x8x8xf32> -> vector<1x8x8xf32>
    "tpu.trace_stop"() : () -> ()
    %cst_19 = arith.constant 0.353553385 : f32
    %52 = vector.broadcast %cst_19 : f32 to vector<1x8x8xf32>
    %53 = math.powf %51, %52 : vector<1x8x8xf32>
    %54 = vector.shape_cast %53 : vector<1x8x8xf32> to vector<8x8xf32>
    %c3 = arith.constant 3 : index
    %c0_20 = arith.constant 0 : index
    %c0_21 = arith.constant 0 : index
    %55 = vector.load %arg7[%c3, %c0_20, %c0_21] : memref<4x8x8xf32, #tpu.memory_space<vmem>>, vector<1x8x8xf32>
    %56 = vector.shape_cast %55 : vector<1x8x8xf32> to vector<8x8xf32>
    %57 = vector.shape_cast %54 : vector<8x8xf32> to vector<1x8x8xf32>
    tpu.vector_store %arg7[%c3, %c0_20, %c0_21], %57 {strides = array<i32>} : memref<4x8x8xf32, #tpu.memory_space<vmem>>, vector<1x8x8xf32>,
    %c0_22 = arith.constant 0 : index
    %c0_23 = arith.constant 0 : index
    %c0_24 = arith.constant 0 : index
    %58 = vector.load %arg7[%c0_22, %c0_23, %c0_24] : memref<4x8x8xf32, #tpu.memory_space<vmem>>, vector<4x8x8xf32>
    %cst_25 = arith.constant dense<0xFF800000> : vector<8x8xf32>
    %59 = vector.multi_reduction <maximumf>, %58, %cst_25 [0] : vector<4x8x8xf32> to vector<8x8xf32>
    %60 = vector.shape_cast %59 : vector<8x8xf32> to vector<1x8x8xf32>
    %61 = vector.broadcast %60 : vector<1x8x8xf32> to vector<4x8x8xf32>
    %62 = arith.subf %58, %61 : vector<4x8x8xf32>
    %63 = math.exp %62 : vector<4x8x8xf32>
    %cst_26 = arith.constant dense<0.000000e+00> : vector<8x8xf32>
    %64 = vector.multi_reduction <add>, %63, %cst_26 [0] : vector<4x8x8xf32> to vector<8x8xf32>
    %65 = vector.shape_cast %64 : vector<8x8xf32> to vector<1x8x8xf32>
    %66 = tpu.reciprocal %65 {approx = true} : vector<1x8x8xf32> -> vector<1x8x8xf32>
    %67 = vector.broadcast %66 : vector<1x8x8xf32> to vector<4x8x8xf32>
    %68 = arith.mulf %63, %67 : vector<4x8x8xf32>
    %69 = vector.extract_strided_slice %68 {offsets = [0, 0, 0], sizes = [1, 8, 8], strides = [1, 1, 1]} : vector<4x8x8xf32> to vector<1x8x8xf32>
    %70 = vector.shape_cast %69 : vector<1x8x8xf32> to vector<8x8xf32>
    %71 = vector.shape_cast %70 : vector<8x8xf32> to vector<1x8x8xf32>
    "tpu.trace_start"() <{level = 10 : i32, message = "bqk,bkd->bqd"}> : () -> ()
    %cst_27 = arith.constant dense<0.000000e+00> : vector<1x8x8xf32>
    %72 = tpu.matmul %71, %23, %cst_27 {dimension_numbers = #tpu.dot_dimension_numbers<[2], [1], [1], [2], [0, 0, 0, 1, 1, 2], [0], [0]>} : vector<1x8x8xf32>, vector<1x8x8xf32>, vector<1x8x8xf32> -> vector<1x8x8xf32>
    "tpu.trace_stop"() : () -> ()
    %73 = vector.shape_cast %72 : vector<1x8x8xf32> to vector<8x8xf32>
    %c0_28 = arith.constant 0 : index
    %c0_29 = arith.constant 0 : index
    %74 = vector.load %arg8[%c0_28, %c0_29] : memref<8x32xf32, #tpu.memory_space<vmem>>, vector<8x8xf32>
    tpu.vector_store %arg8[%c0_28, %c0_29], %73 {strides = array<i32>} : memref<8x32xf32, #tpu.memory_space<vmem>>, vector<8x8xf32>,
    %75 = vector.extract_strided_slice %68 {offsets = [1, 0, 0], sizes = [1, 8, 8], strides = [1, 1, 1]} : vector<4x8x8xf32> to vector<1x8x8xf32>
    %76 = vector.shape_cast %75 : vector<1x8x8xf32> to vector<8x8xf32>
    %77 = vector.shape_cast %76 : vector<8x8xf32> to vector<1x8x8xf32>
    "tpu.trace_start"() <{level = 10 : i32, message = "bqk,bkd->bqd"}> : () -> ()
    %cst_30 = arith.constant dense<0.000000e+00> : vector<1x8x8xf32>
    %78 = tpu.matmul %77, %25, %cst_30 {dimension_numbers = #tpu.dot_dimension_numbers<[2], [1], [1], [2], [0, 0, 0, 1, 1, 2], [0], [0]>} : vector<1x8x8xf32>, vector<1x8x8xf32>, vector<1x8x8xf32> -> vector<1x8x8xf32>
    "tpu.trace_stop"() : () -> ()
    %79 = vector.shape_cast %78 : vector<1x8x8xf32> to vector<8x8xf32>
    %c0_31 = arith.constant 0 : index
    %c8 = arith.constant 8 : index
    %80 = vector.load %arg8[%c0_31, %c8] : memref<8x32xf32, #tpu.memory_space<vmem>>, vector<8x8xf32>
    tpu.vector_store %arg8[%c0_31, %c8], %79 {strides = array<i32>} : memref<8x32xf32, #tpu.memory_space<vmem>>, vector<8x8xf32>,
    %81 = vector.extract_strided_slice %68 {offsets = [2, 0, 0], sizes = [1, 8, 8], strides = [1, 1, 1]} : vector<4x8x8xf32> to vector<1x8x8xf32>
    %82 = vector.shape_cast %81 : vector<1x8x8xf32> to vector<8x8xf32>
    %83 = vector.shape_cast %82 : vector<8x8xf32> to vector<1x8x8xf32>
    "tpu.trace_start"() <{level = 10 : i32, message = "bqk,bkd->bqd"}> : () -> ()
    %cst_32 = arith.constant dense<0.000000e+00> : vector<1x8x8xf32>
    %84 = tpu.matmul %83, %27, %cst_32 {dimension_numbers = #tpu.dot_dimension_numbers<[2], [1], [1], [2], [0, 0, 0, 1, 1, 2], [0], [0]>} : vector<1x8x8xf32>, vector<1x8x8xf32>, vector<1x8x8xf32> -> vector<1x8x8xf32>
    "tpu.trace_stop"() : () -> ()
    %85 = vector.shape_cast %84 : vector<1x8x8xf32> to vector<8x8xf32>
    %c0_33 = arith.constant 0 : index
    %c16 = arith.constant 16 : index
    %86 = vector.load %arg8[%c0_33, %c16] : memref<8x32xf32, #tpu.memory_space<vmem>>, vector<8x8xf32>
    tpu.vector_store %arg8[%c0_33, %c16], %85 {strides = array<i32>} : memref<8x32xf32, #tpu.memory_space<vmem>>, vector<8x8xf32>,
    %87 = vector.extract_strided_slice %68 {offsets = [3, 0, 0], sizes = [1, 8, 8], strides = [1, 1, 1]} : vector<4x8x8xf32> to vector<1x8x8xf32>
    %88 = vector.shape_cast %87 : vector<1x8x8xf32> to vector<8x8xf32>
    %89 = vector.shape_cast %88 : vector<8x8xf32> to vector<1x8x8xf32>
    "tpu.trace_start"() <{level = 10 : i32, message = "bqk,bkd->bqd"}> : () -> ()
    %cst_34 = arith.constant dense<0.000000e+00> : vector<1x8x8xf32>
    %90 = tpu.matmul %89, %29, %cst_34 {dimension_numbers = #tpu.dot_dimension_numbers<[2], [1], [1], [2], [0, 0, 0, 1, 1, 2], [0], [0]>} : vector<1x8x8xf32>, vector<1x8x8xf32>, vector<1x8x8xf32> -> vector<1x8x8xf32>
    "tpu.trace_stop"() : () -> ()
    %91 = vector.shape_cast %90 : vector<1x8x8xf32> to vector<8x8xf32>
    %c0_35 = arith.constant 0 : index
    %c24 = arith.constant 24 : index
    %92 = vector.load %arg8[%c0_35, %c24] : memref<8x32xf32, #tpu.memory_space<vmem>>, vector<8x8xf32>
    tpu.vector_store %arg8[%c0_35, %c24], %91 {strides = array<i32>} : memref<8x32xf32, #tpu.memory_space<vmem>>, vector<8x8xf32>,
    %c0_36 = arith.constant 0 : index
    %c0_37 = arith.constant 0 : index
    %93 = vector.load %arg8[%c0_36, %c0_37] : memref<8x32xf32, #tpu.memory_space<vmem>>, vector<8x32xf32>
    %c0_38 = arith.constant 0 : index
    %c0_39 = arith.constant 0 : index
    %94 = vector.load %arg4[%c0_38, %c0_39] : memref<32x32xf32, #tpu.memory_space<vmem>>, vector<32x32xf32>
    %cst_40 = arith.constant dense<0.000000e+00> : vector<8x32xf32>
    %95 = tpu.matmul %93, %94, %cst_40 {dimension_numbers = #tpu.dot_dimension_numbers<[1], [0], [0], [1], [0, 0, 1, 1], [], []>} : vector<8x32xf32>, vector<32x32xf32>, vector<8x32xf32> -> vector<8x32xf32>
    %c0_41 = arith.constant 0 : index
    %c0_42 = arith.constant 0 : index
    %96 = vector.load %arg5[%c0_41, %c0_42] : memref<1x32xf32, #tpu.memory_space<vmem>>, vector<1x32xf32>
    %97 = vector.broadcast %96 : vector<1x32xf32> to vector<8x32xf32>
    %98 = arith.addf %95, %97 : vector<8x32xf32>
    %c0_43 = arith.constant 0 : index
    %c0_44 = arith.constant 0 : index
    %99 = vector.load %arg6[%c0_43, %c0_44] : memref<8x32xf32, #tpu.memory_space<vmem>>, vector<8x32xf32>
    tpu.vector_store %arg6[%c0_43, %c0_44], %98 {strides = array<i32>} : memref<8x32xf32, #tpu.memory_space<vmem>>, vector<8x32xf32>,
    return
  }
  func.func @transform_0(%arg0: i32) -> (i32, i32) {
    %c0_i32 = arith.constant 0 : i32
    %c0_i32_0 = arith.constant 0 : i32
    return %arg0, %c0_i32 : i32, i32
  }
  func.func @transform_1(%arg0: i32) -> (i32, i32) {
    %c0_i32 = arith.constant 0 : i32
    %c0_i32_0 = arith.constant 0 : i32
    %c0_i32_1 = arith.constant 0 : i32
    return %c0_i32, %c0_i32_0 : i32, i32
  }
  func.func @transform_2(%arg0: i32) -> (i32, i32) {
    %c0_i32 = arith.constant 0 : i32
    %c0_i32_0 = arith.constant 0 : i32
    %c0_i32_1 = arith.constant 0 : i32
    return %c0_i32, %c0_i32_0 : i32, i32
  }
  func.func @transform_3(%arg0: i32) -> (i32, i32) {
    %c0_i32 = arith.constant 0 : i32
    %c0_i32_0 = arith.constant 0 : i32
    %c0_i32_1 = arith.constant 0 : i32
    return %c0_i32, %c0_i32_0 : i32, i32
  }
  func.func @transform_4(%arg0: i32) -> (i32, i32) {
    %c0_i32 = arith.constant 0 : i32
    %c0_i32_0 = arith.constant 0 : i32
    %c0_i32_1 = arith.constant 0 : i32
    return %c0_i32, %c0_i32_0 : i32, i32
  }
  func.func @transform_5(%arg0: i32) -> (i32, i32) {
    %c0_i32 = arith.constant 0 : i32
    %c0_i32_0 = arith.constant 0 : i32
    return %arg0, %c0_i32 : i32, i32
  }
}

</mosaic_0001>

<llo_original>
// kernel: tpu_custom_call.1
$region0: #{tpu_custom_call.1}
  #allocation0 [shape = 'u32[]', space=smem, size = 0x4, offset = 0x4, fixed_abs, tag = 'smem constant byte address 0x4 - core index']
  #allocation1 [shape = 'u32[144,128]{1,0:T(1,128)}', space=vmem, size = 0x12000, scoped, tag = 'internal scratch']
  #allocation2 [shape = 'f32[4,8,8]{2,1,0:T(8,128)}', space=vmem, size = 0x4000, scoped, tag = 'scratch operand']
  #allocation3 [shape = 'f32[8,32]{1,0:T(8,128)}', space=vmem, size = 0x1000, scoped, tag = 'scratch operand']
  %s0 = inlined_call_operand.hbm [shape: f32[16,32], index: 0, kind: input, shape index: {}]
  %s1 = inlined_call_operand.hbm [shape: f32[32,96], index: 1, kind: input, shape index: {}]
  %s2 = inlined_call_operand.vmem [shape: f32[1,96], index: 2, kind: input, shape index: {}]
  %s3 = inlined_call_operand.hbm [shape: f32[32,32], index: 3, kind: input, shape index: {}]
  %s4 = inlined_call_operand.vmem [shape: f32[1,32], index: 4, kind: input, shape index: {}]
  %s5 = inlined_call_operand.hbm [shape: f32[16,32], index: 5, kind: output, shape index: {}]
  %s6 = sld [smem:[#allocation0]]
  $region65: #{tpu_custom_call.1} parent=0
    _
  %s8 = ssub.s32 1, %s6
  %s9 = scalar_select 0, %s8, %s6
  $region1: #{tpu_custom_call.1} parent=0
    #allocation4 [shape = 'u8[8192]{0}', space=vmem, size = 0x2000, scoped, tag = 'input window, operand 0']
    #allocation5 [shape = 's32[2]{0}', space=sflag, size = 0x8, scoped, tag = 'scoped memory for tpu_custom_call.1']
    #allocation6 [shape = 's32[2]{0}', space=sflag, size = 0x8, scoped, tag = 'scoped memory for tpu_custom_call.1']
    #allocation7 [shape = 'u8[16384]{0}', space=vmem, size = 0x4000, scoped, tag = 'input window, operand 1, single buffered']
    #allocation8 [shape = 's32[1]{0}', space=sflag, size = 0x4, scoped, tag = 'scoped memory for tpu_custom_call.1']
    #allocation9 [shape = 'u8[16384]{0}', space=vmem, size = 0x4000, scoped, tag = 'input window, operand 3, single buffered']
    #allocation10 [shape = 'u8[8192]{0}', space=vmem, size = 0x2000, scoped, tag = 'output window, operand 0']
    %10 = vsyncpa [#allocation5], 0
    %s11 = scalar_lea.sflag [#allocation5], 1
    %12 = vsyncpa %s11, 0
    %13 = vsyncpa [#allocation8], 0
    %14 = vsyncpa [#allocation6], 0
    %s15 = scalar_lea.sflag [#allocation6], 1
    %16 = vsyncpa %s15, 0
    loop: start=0, step=1, limit=4
    $region2: #{tpu_custom_call.1} parent=1 // loop_pre_header
      _
    $region3: #{tpu_custom_call.1} parent=1 // loop_header
      %s18 = sphi 0, %s22
      %p19 = scmp.ge.s32.totalorder %s18, 4
      %s28 = sphi 0, %s30
      %s31 = sphi 0, %s28
      %s32 = sphi 0, %s31
      %s48 = sphi 0, %s32
      %s52 = sphi 0, %s52
      %s54 = sphi 0, %s52
      %s55 = sphi 0, %s54
      %s69 = sphi 0, %s55
      %s73 = sphi 0, %s73
      %s75 = sphi 0, %s73
      %s76 = sphi 0, %s75
      %s90 = sphi 0, %s76
      %s94 = sphi 0, %s94
      %s96 = sphi 0, %s94
      %s97 = sphi 0, %s96
      %s111 = sphi 0, %s97
      %s115 = sphi 0, %s115
      %s117 = sphi 0, %s115
      %s118 = sphi 0, %s117
      %s132 = sphi 0, %s118
      %s138 = sphi 0, %s140
      %s141 = sphi 0, %s138
      %s142 = sphi 0, %s141
      %s158 = sphi 0, %s142
    $region4: #{tpu_custom_call.1} parent=1 // loop_header_branch
      %21 = sbr.rel (%p19) target = $region8
    $region5: #{tpu_custom_call.1} parent=1 // loop_body
      %s23 = ssub.s32 %s18, 1
      %s24 = ssub.s32 %s18, 2
      %s25 = sadd.s32 %s18, 1
      %s26 = ssub.s32 %s18, %s25
      %p27 = scmp.eq.s32.totalorder %s26, 0
      %s29 = sadd.s32 %s28, 1
      %s30 = scalar_select %p27, %s28, %s29
      %p33 = pneg %p27
      %p34 = scmp.eq.s32.totalorder %s18, 1
      %p35 = por %p33, %p34
      %p36 = scmp.ne.s32.totalorder %s28, %s31
      %p37 = scmp.eq.s32.totalorder %s18, 0
      %p38 = por %p36, %p37
      %p39 = scmp.ne.s32.totalorder %s28, %s31
      %p40 = scmp.eq.s32.totalorder %s23, 1
      %p41 = por %p39, %p40
      %p42 = scmp.ne.s32.totalorder %s31, %s32
      %p43 = scmp.eq.s32.totalorder %s23, 0
      %p44 = por %p42, %p43
      %p45 = scmp.ne.s32.totalorder %s31, %s32
      %p46 = scmp.eq.s32.totalorder %s24, 1
      %p47 = por %p45, %p46
      %p49 = scmp.ne.s32.totalorder %s32, %s48
      %p50 = scmp.eq.s32.totalorder %s24, 0
      %p51 = por %p49, %p50
      %s53 = sadd.s32 %s52, 1
      %p56 = scmp.eq.s32.totalorder %s18, 1
      %p57 = scmp.ne.s32.totalorder %s52, %s54
      %p58 = scmp.eq.s32.totalorder %s18, 0
      %p59 = por %p57, %p58
      %p60 = scmp.ne.s32.totalorder %s52, %s54
      %p61 = scmp.eq.s32.totalorder %s23, 1
      %p62 = por %p60, %p61
      %p63 = scmp.ne.s32.totalorder %s54, %s55
      %p64 = scmp.eq.s32.totalorder %s23, 0
      %p65 = por %p63, %p64
      %p66 = scmp.ne.s32.totalorder %s54, %s55
      %p67 = scmp.eq.s32.totalorder %s24, 1
      %p68 = por %p66, %p67
      %p70 = scmp.ne.s32.totalorder %s55, %s69
      %p71 = scmp.eq.s32.totalorder %s24, 0
      %p72 = por %p70, %p71
      %s74 = sadd.s32 %s73, 1
      %p77 = scmp.eq.s32.totalorder %s18, 1
      %p78 = scmp.ne.s32.totalorder %s73, %s75
      %p79 = scmp.eq.s32.totalorder %s18, 0
      %p80 = por %p78, %p79
      %p81 = scmp.ne.s32.totalorder %s73, %s75
      %p82 = scmp.eq.s32.totalorder %s23, 1
      %p83 = por %p81, %p82
      %p84 = scmp.ne.s32.totalorder %s75, %s76
      %p85 = scmp.eq.s32.totalorder %s23, 0
      %p86 = por %p84, %p85
      %p87 = scmp.ne.s32.totalorder %s75, %s76
      %p88 = scmp.eq.s32.totalorder %s24, 1
      %p89 = por %p87, %p88
      %p91 = scmp.ne.s32.totalorder %s76, %s90
      %p92 = scmp.eq.s32.totalorder %s24, 0
      %p93 = por %p91, %p92
      %s95 = sadd.s32 %s94, 1
      %p98 = scmp.eq.s32.totalorder %s18, 1
      %p99 = scmp.ne.s32.totalorder %s94, %s96
      %p100 = scmp.eq.s32.totalorder %s18, 0
      %p101 = por %p99, %p100
      %p102 = scmp.ne.s32.totalorder %s94, %s96
      %p103 = scmp.eq.s32.totalorder %s23, 1
      %p104 = por %p102, %p103
      %p105 = scmp.ne.s32.totalorder %s96, %s97
      %p106 = scmp.eq.s32.totalorder %s23, 0
      %p107 = por %p105, %p106
      %p108 = scmp.ne.s32.totalorder %s96, %s97
      %p109 = scmp.eq.s32.totalorder %s24, 1
      %p110 = por %p108, %p109
      %p112 = scmp.ne.s32.totalorder %s97, %s111
      %p113 = scmp.eq.s32.totalorder %s24, 0
      %p114 = por %p112, %p113
      %s116 = sadd.s32 %s115, 1
      %p119 = scmp.eq.s32.totalorder %s18, 1
      %p120 = scmp.ne.s32.totalorder %s115, %s117
      %p121 = scmp.eq.s32.totalorder %s18, 0
      %p122 = por %p120, %p121
      %p123 = scmp.ne.s32.totalorder %s115, %s117
      %p124 = scmp.eq.s32.totalorder %s23, 1
      %p125 = por %p123, %p124
      %p126 = scmp.ne.s32.totalorder %s117, %s118
      %p127 = scmp.eq.s32.totalorder %s23, 0
      %p128 = por %p126, %p127
      %p129 = scmp.ne.s32.totalorder %s117, %s118
      %p130 = scmp.eq.s32.totalorder %s24, 1
      %p131 = por %p129, %p130
      %p133 = scmp.ne.s32.totalorder %s118, %s132
      %p134 = scmp.eq.s32.totalorder %s24, 0
      %p135 = por %p133, %p134
      %s136 = ssub.s32 %s18, %s25
      %p137 = scmp.eq.s32.totalorder %s136, 0
      %s139 = sadd.s32 %s138, 1
      %s140 = scalar_select %p137, %s138, %s139
      %p143 = pneg %p137
      %p144 = scmp.eq.s32.totalorder %s18, 1
      %p145 = por %p143, %p144
      %p146 = scmp.ne.s32.totalorder %s138, %s141
      %p147 = scmp.eq.s32.totalorder %s18, 0
      %p148 = por %p146, %p147
      %p149 = scmp.ne.s32.totalorder %s138, %s141
      %p150 = scmp.eq.s32.totalorder %s23, 1
      %p151 = por %p149, %p150
      %p152 = scmp.ne.s32.totalorder %s141, %s142
      %p153 = scmp.eq.s32.totalorder %s23, 0
      %p154 = por %p152, %p153
      %p155 = scmp.ne.s32.totalorder %s141, %s142
      %p156 = scmp.eq.s32.totalorder %s24, 1
      %p157 = por %p155, %p156
      %p159 = scmp.ne.s32.totalorder %s142, %s158
      %p160 = scmp.eq.s32.totalorder %s24, 0
      %p161 = por %p159, %p160
      %p162 = scmp.le.s32.totalorder 1, %s18
      %p163 = scmp.lt.s32.totalorder %s18, 3
      %p164 = pnand %p162, %p163
      %p165 = pneg %p164
      // Predicated region
      $region9: #{tpu_custom_call.1} parent=5 // pred_check
        _
      $region10: #{tpu_custom_call.1} parent=5 // pred_check_branch
        %167 = sbr.rel (%p164) target = $region12
      $region11: #{tpu_custom_call.1} parent=5 // pred_region
        %s168 = ssub.s32 %s18, 1
        // Predicated region
        $region13: #{tpu_custom_call.1} parent=11 // pred_check
          %p169 = pneg %p65
        $region14: #{tpu_custom_call.1} parent=11 // pred_check_branch
          %171 = sbr.rel (%p169) target = $region16
        $region15: #{tpu_custom_call.1} parent=11 // pred_region
          %s173 = ssub.s32 512, 512
          %174 = vsyncadd [#allocation8], %s173
          %s175 = sshll.u32 [#allocation7], 4
          %s176 = int_to_ptr.vmem [resolvable:$true] %s175
          %181 = dma.hbm_to_vmem [thread:$0]  %s1, 512, %s176, [#allocation8], 128, 128, 8
        $region16: #{tpu_custom_call.1} parent=11 // pred_fallthru
          _
        // Predicated region
        $region17: #{tpu_custom_call.1} parent=11 // pred_check
          %p182 = pneg %p86
        $region18: #{tpu_custom_call.1} parent=11 // pred_check_branch
          %184 = sbr.rel (%p182) target = $region20
        $region19: #{tpu_custom_call.1} parent=11 // pred_region
          _
        $region20: #{tpu_custom_call.1} parent=11 // pred_fallthru
          _
        // Predicated region
        $region21: #{tpu_custom_call.1} parent=11 // pred_check
          %p185 = pneg %p107
        $region22: #{tpu_custom_call.1} parent=11 // pred_check_branch
          %187 = sbr.rel (%p185) target = $region24
        $region23: #{tpu_custom_call.1} parent=11 // pred_region
          %s189 = ssub.s32 512, 512
          %190 = vsyncadd [#allocation8], %s189
          %s191 = sshll.u32 [#allocation9], 4
          %s192 = int_to_ptr.vmem [resolvable:$true] %s191
          %197 = dma.hbm_to_vmem [thread:$0]  %s3, 512, %s192, [#allocation8], 128, 128, 8
        $region24: #{tpu_custom_call.1} parent=11 // pred_fallthru
          _
        // Predicated region
        $region25: #{tpu_custom_call.1} parent=11 // pred_check
          %p198 = pneg %p128
        $region26: #{tpu_custom_call.1} parent=11 // pred_check_branch
          %200 = sbr.rel (%p198) target = $region28
        $region27: #{tpu_custom_call.1} parent=11 // pred_region
          _
        $region28: #{tpu_custom_call.1} parent=11 // pred_fallthru
          _
      $region12: #{tpu_custom_call.1} parent=5 // pred_fallthru
        _
      %p201 = scmp.lt.s32.totalorder %s18, 2
      // Predicated region
      $region29: #{tpu_custom_call.1} parent=5 // pred_check
        %p202 = pneg %p201
      $region30: #{tpu_custom_call.1} parent=5 // pred_check_branch
        %204 = sbr.rel (%p202) target = $region32
      $region31: #{tpu_custom_call.1} parent=5 // pred_region
        // Predicated region
        $region33: #{tpu_custom_call.1} parent=31 // pred_check
          %p205 = pneg %p38
        $region34: #{tpu_custom_call.1} parent=31 // pred_check_branch
          %207 = sbr.rel (%p205) target = $region36
        $region35: #{tpu_custom_call.1} parent=31 // pred_region
          %s208 = sand.u32 %s28, 1
          %s209 = scalar_lea.sflag [#allocation5], %s208
          %s210 = sand.u32 %s28, 1
          %s211 = smul.addr %s210, 8
          %s212 = scalar_lea.vmem [#allocation4], %s211
          %s214 = ssub.s32 128, 128
          %215 = vsyncadd %s209, %s214
          %s216 = smul.addr %s18, 128
          %s217 = scalar_lea.hbm %s0, %s216
          %s219 = sshll.u32 %s212, 4
          %s220 = int_to_ptr.vmem [resolvable:$true] %s219
          %222 = dma.hbm_to_vmem [thread:$0]  %s217, 128, %s220, %s209
        $region36: #{tpu_custom_call.1} parent=31 // pred_fallthru
          _
      $region32: #{tpu_custom_call.1} parent=5 // pred_fallthru
        _
      %p223 = scmp.le.s32.totalorder 1, %s18
      %p224 = scmp.lt.s32.totalorder %s18, 3
      %p225 = pnand %p223, %p224
      %p226 = pneg %p225
      // Predicated region
      $region37: #{tpu_custom_call.1} parent=5 // pred_check
        _
      $region38: #{tpu_custom_call.1} parent=5 // pred_check_branch
        %228 = sbr.rel (%p225) target = $region40
      $region39: #{tpu_custom_call.1} parent=5 // pred_region
        %s229 = ssub.s32 %s18, 1
        %s230 = sand.u32 %s31, 1
        %s231 = scalar_lea.sflag [#allocation5], %s230
        %s232 = sand.u32 %s31, 1
        %s233 = smul.addr %s232, 8
        %s234 = scalar_lea.vmem [#allocation4], %s233
        // Predicated region
        $region41: #{tpu_custom_call.1} parent=39 // pred_check
          %p235 = pneg %p44
        $region42: #{tpu_custom_call.1} parent=39 // pred_check_branch
          %237 = sbr.rel (%p235) target = $region44
        $region43: #{tpu_custom_call.1} parent=39 // pred_region
          %238 = dma.done %s231, 128
        $region44: #{tpu_custom_call.1} parent=39 // pred_fallthru
          _
        // Predicated region
        $region45: #{tpu_custom_call.1} parent=39 // pred_check
          %p239 = pneg %p65
        $region46: #{tpu_custom_call.1} parent=39 // pred_check_branch
          %241 = sbr.rel (%p239) target = $region48
        $region47: #{tpu_custom_call.1} parent=39 // pred_region
          %242 = dma.done [#allocation8], 512
        $region48: #{tpu_custom_call.1} parent=39 // pred_fallthru
          _
        // Predicated region
        $region49: #{tpu_custom_call.1} parent=39 // pred_check
          %p243 = pneg %p107
        $region50: #{tpu_custom_call.1} parent=39 // pred_check_branch
          %245 = sbr.rel (%p243) target = $region52
        $region51: #{tpu_custom_call.1} parent=39 // pred_region
          %246 = dma.done [#allocation8], 512
        $region52: #{tpu_custom_call.1} parent=39 // pred_fallthru
          _
        %s247 = sand.u32 %s31, 1
        %s248 = scalar_lea.sflag [#allocation5], %s247
        %s249 = sand.u32 %s31, 1
        %s250 = smul.addr %s249, 8
        %s251 = scalar_lea.vmem [#allocation4], %s250
        %p252 = pneg %p44
        %p253 = pneg %p41
        %p254 = pneg %p65
        %p255 = pneg %p62
        %p256 = pneg %p86
        %p257 = pneg %p83
        %p258 = pneg %p107
        %p259 = pneg %p104
        %p260 = pneg %p128
        %p261 = pneg %p125
        %p262 = pneg %p154
        %p263 = pneg %p151
        %s264 = sand.u32 %s141, 1
        %s265 = scalar_lea.sflag [#allocation6], %s264
        %s266 = sand.u32 %s141, 1
        %s267 = smul.addr %s266, 8
        %s268 = scalar_lea.vmem [#allocation10], %s267
        %v269 = vld [vmem:[%s234] sm:$0xff]
        %v270 = vld [vmem:[#allocation7] sm:$0xff]
        %v271 = vld [vmem:[#allocation7 + $0x8] sm:$0xff]
        %v272 = vld [vmem:[#allocation7 + $0x10] sm:$0xff]
        %v273 = vld [vmem:[#allocation7 + $0x18] sm:$0xff]
        %v274 = vld [vmem:[%s2] sm:$0x1]
        %v276 = vlaneseq
        %v277 = vshrl.u32 %v276, 7
        %v278 = vsub.s32 0, %v277
        %v279 = vrot.slane %v274, %v278
        %vm281 = vcmask 261120
        %v283 = vsel %vm281, %v269, 0
        %285 = vmatprep.subr.mxu0 0.0
        %286 = vmatpush1.msra.mxu0 %v270
        %287 = vmatprep.subr.mxu0 0.0
        %288 = vmatpush1.msra.mxu0 %v271
        %289 = vmatprep.subr.mxu0 0.0
        %290 = vmatpush1.msra.mxu0 %v272
        %291 = vmatprep.subr.mxu0 0.0
        %292 = vmatpush1.msra.mxu0 %v273
        %293 = vmatprep.subr.mxu0 0.0
        %294 = vmatpush1.msra.mxu0 0.0
        %295 = vmatprep.subr.mxu0 0.0
        %296 = vmatpush1.msra.mxu0 0.0
        %297 = vmatprep.subr.mxu0 0.0
        %298 = vmatpush1.msra.mxu0 0.0
        %299 = vmatprep.subr.mxu0 0.0
        %300 = vmatpush1.msra.mxu0 0.0
        %301 = vmatprep.subr.mxu0 0.0
        %302 = vmatpush1.msra.mxu0 0.0
        %303 = vmatprep.subr.mxu0 0.0
        %304 = vmatpush1.msra.mxu0 0.0
        %305 = vmatprep.subr.mxu0 0.0
        %306 = vmatpush1.msra.mxu0 0.0
        %307 = vmatprep.subr.mxu0 0.0
        %308 = vmatpush1.msra.mxu0 0.0
        %309 = vmatprep.subr.mxu0 0.0
        %310 = vmatpush1.msra.mxu0 0.0
        %311 = vmatprep.subr.mxu0 0.0
        %312 = vmatpush1.msra.mxu0 0.0
        %313 = vmatprep.subr.mxu0 0.0
        %314 = vmatpush1.msra.mxu0 0.0
        %315 = vmatprep.subr.mxu0 0.0
        %316 = vmatpush1.msra.mxu0 0.0
        %317 = vmatprep.subr.mxu0 0.0
        %318 = vmatpush1.msra.mxu0 0.0
        %319 = vmatprep.subr.mxu0 0.0
        %320 = vmatpush1.msra.mxu0 0.0
        %321 = vmatprep.subr.mxu0 0.0
        %322 = vmatpush1.msra.mxu0 0.0
        %323 = vmatprep.subr.mxu0 0.0
        %324 = vmatpush1.msra.mxu0 0.0
        %325 = vmatprep.subr.mxu0 0.0
        %326 = vmatpush1.msra.mxu0 0.0
        %327 = vmatprep.subr.mxu0 0.0
        %328 = vmatpush1.msra.mxu0 0.0
        %329 = vmatprep.subr.mxu0 0.0
        %330 = vmatpush1.msra.mxu0 0.0
        %331 = vmatprep.subr.mxu0 0.0
        %332 = vmatpush1.msra.mxu0 0.0
        %333 = vmatprep.subr.mxu0 0.0
        %334 = vmatpush1.msra.mxu0 0.0
        %335 = vmatprep.subr.mxu0 0.0
        %336 = vmatpush1.msra.mxu0 0.0
        %337 = vmatprep.subr.mxu0 0.0
        %338 = vmatpush1.msra.mxu0 0.0
        %339 = vmatprep.subr.mxu0 0.0
        %340 = vmatpush1.msra.mxu0 0.0
        %341 = vmatprep.subr.mxu0 0.0
        %342 = vmatpush1.msra.mxu0 0.0
        %343 = vmatprep.subr.mxu0 0.0
        %344 = vmatpush1.msra.mxu0 0.0
        %345 = vmatprep.subr.mxu0 0.0
        %346 = vmatpush1.msra.mxu0 0.0
        %347 = vmatprep.subr.mxu0 0.0
        %348 = vmatpush1.msra.mxu0 0.0
        %349 = vmatprep.mubr.f32.mxu0 0.0
        %350 = vmatmul.mubr.f32.gmra.mrb[0].mxu0 %v283
        %v351 = vpop.f32.mrb[0].mxu0
        %v352 = vadd.f32 %v279, %v351
        %v353 = vpop.f32.mrb[0].mxu0
        %354 = vdwg.mxu0
        %356 = vrot.lane.b32.xlu0 %v352, 96
        %v357 = vpop.permute.xlu0 %356
        %vm358 = vcmask 64512
        %v359 = vsel %vm358, %v352, 0
        %v361 = vsel %vm358, %v357, 0
        %363 = vmatprep.subr.mxu0 0.0
        %364 = vmatpush1.xpose.msra.mxu0 %v361
        %365 = vmatprep.subr.mxu0 0.0
        %366 = vmatpush1.xpose.msra.mxu0 0.0
        %367 = vmatprep.subr.mxu0 0.0
        %368 = vmatpush1.xpose.msra.mxu0 0.0
        %369 = vmatprep.subr.mxu0 0.0
        %370 = vmatpush1.xpose.msra.mxu0 0.0
        %371 = vmatprep.subr.mxu0 0.0
        %372 = vmatpush1.xpose.msra.mxu0 0.0
        %373 = vmatprep.subr.mxu0 0.0
        %374 = vmatpush1.xpose.msra.mxu0 0.0
        %375 = vmatprep.subr.mxu0 0.0
        %376 = vmatpush1.xpose.msra.mxu0 0.0
        %377 = vmatprep.subr.mxu0 0.0
        %378 = vmatpush1.xpose.msra.mxu0 0.0
        %379 = vmatprep.subr.mxu0 0.0
        %380 = vmatpush1.xpose.msra.mxu0 0.0
        %381 = vmatprep.subr.mxu0 0.0
        %382 = vmatpush1.xpose.msra.mxu0 0.0
        %383 = vmatprep.subr.mxu0 0.0
        %384 = vmatpush1.xpose.msra.mxu0 0.0
        %385 = vmatprep.subr.mxu0 0.0
        %386 = vmatpush1.xpose.msra.mxu0 0.0
        %387 = vmatprep.subr.mxu0 0.0
        %388 = vmatpush1.xpose.msra.mxu0 0.0
        %389 = vmatprep.subr.mxu0 0.0
        %390 = vmatpush1.xpose.msra.mxu0 0.0
        %391 = vmatprep.subr.mxu0 0.0
        %392 = vmatpush1.xpose.msra.mxu0 0.0
        %393 = vmatprep.subr.mxu0 0.0
        %394 = vmatpush1.xpose.msra.mxu0 0.0
        %395 = vmatprep.subr.mxu0 0.0
        %396 = vmatpush1.xpose.msra.mxu0 0.0
        %397 = vmatprep.subr.mxu0 0.0
        %398 = vmatpush1.xpose.msra.mxu0 0.0
        %399 = vmatprep.subr.mxu0 0.0
        %400 = vmatpush1.xpose.msra.mxu0 0.0
        %401 = vmatprep.subr.mxu0 0.0
        %402 = vmatpush1.xpose.msra.mxu0 0.0
        %403 = vmatprep.subr.mxu0 0.0
        %404 = vmatpush1.xpose.msra.mxu0 0.0
        %405 = vmatprep.subr.mxu0 0.0
        %406 = vmatpush1.xpose.msra.mxu0 0.0
        %407 = vmatprep.subr.mxu0 0.0
        %408 = vmatpush1.xpose.msra.mxu0 0.0
        %409 = vmatprep.subr.mxu0 0.0
        %410 = vmatpush1.xpose.msra.mxu0 0.0
        %411 = vmatprep.subr.mxu0 0.0
        %412 = vmatpush1.xpose.msra.mxu0 0.0
        %413 = vmatprep.subr.mxu0 0.0
        %414 = vmatpush1.xpose.msra.mxu0 0.0
        %415 = vmatprep.subr.mxu0 0.0
        %416 = vmatpush1.xpose.msra.mxu0 0.0
        %417 = vmatprep.subr.mxu0 0.0
        %418 = vmatpush1.xpose.msra.mxu0 0.0
        %419 = vmatprep.subr.mxu0 0.0
        %420 = vmatpush1.xpose.msra.mxu0 0.0
        %421 = vmatprep.subr.mxu0 0.0
        %422 = vmatpush1.xpose.msra.mxu0 0.0
        %423 = vmatprep.subr.mxu0 0.0
        %424 = vmatpush1.xpose.msra.mxu0 0.0
        %425 = vmatprep.subr.mxu0 0.0
        %426 = vmatpush1.xpose.msra.mxu0 0.0
        %427 = vmatprep.mubr.f32.mxu0 0.0
        %428 = vmatmul.mubr.f32.gmra.mrb[0].mxu0 %v359
        %v429 = vpop.f32.mrb[0].mxu0
        %v430 = vadd.f32 0.0, %v429
        %v431 = vpop.f32.mrb[0].mxu0
        %432 = vdwg.mxu0
        %v433 = vpow.f32 %v430, 0.35355338
        %434 = vst.msk [vmem:[#allocation2] sm:$0xff] %vm358, %v433
        %435 = vrot.lane.b32.xlu0 %v352, 120
        %v436 = vpop.permute.xlu0 %435
        %437 = vrot.lane.b32.xlu0 %v352, 88
        %v438 = vpop.permute.xlu0 %437
        %v439 = vsel %vm358, %v436, 0
        %v441 = vsel %vm358, %v438, 0
        %443 = vmatprep.subr.mxu0 0.0
        %444 = vmatpush1.xpose.msra.mxu0 %v441
        %445 = vmatprep.subr.mxu0 0.0
        %446 = vmatpush1.xpose.msra.mxu0 0.0
        %447 = vmatprep.subr.mxu0 0.0
        %448 = vmatpush1.xpose.msra.mxu0 0.0
        %449 = vmatprep.subr.mxu0 0.0
        %450 = vmatpush1.xpose.msra.mxu0 0.0
        %451 = vmatprep.subr.mxu0 0.0
        %452 = vmatpush1.xpose.msra.mxu0 0.0
        %453 = vmatprep.subr.mxu0 0.0
        %454 = vmatpush1.xpose.msra.mxu0 0.0
        %455 = vmatprep.subr.mxu0 0.0
        %456 = vmatpush1.xpose.msra.mxu0 0.0
        %457 = vmatprep.subr.mxu0 0.0
        %458 = vmatpush1.xpose.msra.mxu0 0.0
        %459 = vmatprep.subr.mxu0 0.0
        %460 = vmatpush1.xpose.msra.mxu0 0.0
        %461 = vmatprep.subr.mxu0 0.0
        %462 = vmatpush1.xpose.msra.mxu0 0.0
        %463 = vmatprep.subr.mxu0 0.0
        %464 = vmatpush1.xpose.msra.mxu0 0.0
        %465 = vmatprep.subr.mxu0 0.0
        %466 = vmatpush1.xpose.msra.mxu0 0.0
        %467 = vmatprep.subr.mxu0 0.0
        %468 = vmatpush1.xpose.msra.mxu0 0.0
        %469 = vmatprep.subr.mxu0 0.0
        %470 = vmatpush1.xpose.msra.mxu0 0.0
        %471 = vmatprep.subr.mxu0 0.0
        %472 = vmatpush1.xpose.msra.mxu0 0.0
        %473 = vmatprep.subr.mxu0 0.0
        %474 = vmatpush1.xpose.msra.mxu0 0.0
        %475 = vmatprep.subr.mxu0 0.0
        %476 = vmatpush1.xpose.msra.mxu0 0.0
        %477 = vmatprep.subr.mxu0 0.0
        %478 = vmatpush1.xpose.msra.mxu0 0.0
        %479 = vmatprep.subr.mxu0 0.0
        %480 = vmatpush1.xpose.msra.mxu0 0.0
        %481 = vmatprep.subr.mxu0 0.0
        %482 = vmatpush1.xpose.msra.mxu0 0.0
        %483 = vmatprep.subr.mxu0 0.0
        %484 = vmatpush1.xpose.msra.mxu0 0.0
        %485 = vmatprep.subr.mxu0 0.0
        %486 = vmatpush1.xpose.msra.mxu0 0.0
        %487 = vmatprep.subr.mxu0 0.0
        %488 = vmatpush1.xpose.msra.mxu0 0.0
        %489 = vmatprep.subr.mxu0 0.0
        %490 = vmatpush1.xpose.msra.mxu0 0.0
        %491 = vmatprep.subr.mxu0 0.0
        %492 = vmatpush1.xpose.msra.mxu0 0.0
        %493 = vmatprep.subr.mxu0 0.0
        %494 = vmatpush1.xpose.msra.mxu0 0.0
        %495 = vmatprep.subr.mxu0 0.0
        %496 = vmatpush1.xpose.msra.mxu0 0.0
        %497 = vmatprep.subr.mxu0 0.0
        %498 = vmatpush1.xpose.msra.mxu0 0.0
        %499 = vmatprep.subr.mxu0 0.0
        %500 = vmatpush1.xpose.msra.mxu0 0.0
        %501 = vmatprep.subr.mxu0 0.0
        %502 = vmatpush1.xpose.msra.mxu0 0.0
        %503 = vmatprep.subr.mxu0 0.0
        %504 = vmatpush1.xpose.msra.mxu0 0.0
        %505 = vmatprep.subr.mxu0 0.0
        %506 = vmatpush1.xpose.msra.mxu0 0.0
        %507 = vmatprep.mubr.f32.mxu0 0.0
        %508 = vmatmul.mubr.f32.gmra.mrb[0].mxu0 %v439
        %v509 = vpop.f32.mrb[0].mxu0
        %v510 = vadd.f32 0.0, %v509
        %v511 = vpop.f32.mrb[0].mxu0
        %512 = vdwg.mxu0
        %v513 = vpow.f32 %v510, 0.35355338
        %s514 = scalar_lea.vmem [#allocation2], 8
        %515 = vst.msk [vmem:[%s514] sm:$0xff] %vm358, %v513
        %516 = vrot.lane.b32.xlu0 %v352, 112
        %v517 = vpop.permute.xlu0 %516
        %518 = vrot.lane.b32.xlu0 %v352, 80
        %v519 = vpop.permute.xlu0 %518
        %v520 = vsel %vm358, %v517, 0
        %v522 = vsel %vm358, %v519, 0
        %524 = vmatprep.subr.mxu0 0.0
        %525 = vmatpush1.xpose.msra.mxu0 %v522
        %526 = vmatprep.subr.mxu0 0.0
        %527 = vmatpush1.xpose.msra.mxu0 0.0
        %528 = vmatprep.subr.mxu0 0.0
        %529 = vmatpush1.xpose.msra.mxu0 0.0
        %530 = vmatprep.subr.mxu0 0.0
        %531 = vmatpush1.xpose.msra.mxu0 0.0
        %532 = vmatprep.subr.mxu0 0.0
        %533 = vmatpush1.xpose.msra.mxu0 0.0
        %534 = vmatprep.subr.mxu0 0.0
        %535 = vmatpush1.xpose.msra.mxu0 0.0
        %536 = vmatprep.subr.mxu0 0.0
        %537 = vmatpush1.xpose.msra.mxu0 0.0
        %538 = vmatprep.subr.mxu0 0.0
        %539 = vmatpush1.xpose.msra.mxu0 0.0
        %540 = vmatprep.subr.mxu0 0.0
        %541 = vmatpush1.xpose.msra.mxu0 0.0
        %542 = vmatprep.subr.mxu0 0.0
        %543 = vmatpush1.xpose.msra.mxu0 0.0
        %544 = vmatprep.subr.mxu0 0.0
        %545 = vmatpush1.xpose.msra.mxu0 0.0
        %546 = vmatprep.subr.mxu0 0.0
        %547 = vmatpush1.xpose.msra.mxu0 0.0
        %548 = vmatprep.subr.mxu0 0.0
        %549 = vmatpush1.xpose.msra.mxu0 0.0
        %550 = vmatprep.subr.mxu0 0.0
        %551 = vmatpush1.xpose.msra.mxu0 0.0
        %552 = vmatprep.subr.mxu0 0.0
        %553 = vmatpush1.xpose.msra.mxu0 0.0
        %554 = vmatprep.subr.mxu0 0.0
        %555 = vmatpush1.xpose.msra.mxu0 0.0
        %556 = vmatprep.subr.mxu0 0.0
        %557 = vmatpush1.xpose.msra.mxu0 0.0
        %558 = vmatprep.subr.mxu0 0.0
        %559 = vmatpush1.xpose.msra.mxu0 0.0
        %560 = vmatprep.subr.mxu0 0.0
        %561 = vmatpush1.xpose.msra.mxu0 0.0
        %562 = vmatprep.subr.mxu0 0.0
        %563 = vmatpush1.xpose.msra.mxu0 0.0
        %564 = vmatprep.subr.mxu0 0.0
        %565 = vmatpush1.xpose.msra.mxu0 0.0
        %566 = vmatprep.subr.mxu0 0.0
        %567 = vmatpush1.xpose.msra.mxu0 0.0
        %568 = vmatprep.subr.mxu0 0.0
        %569 = vmatpush1.xpose.msra.mxu0 0.0
        %570 = vmatprep.subr.mxu0 0.0
        %571 = vmatpush1.xpose.msra.mxu0 0.0
        %572 = vmatprep.subr.mxu0 0.0
        %573 = vmatpush1.xpose.msra.mxu0 0.0
        %574 = vmatprep.subr.mxu0 0.0
        %575 = vmatpush1.xpose.msra.mxu0 0.0
        %576 = vmatprep.subr.mxu0 0.0
        %577 = vmatpush1.xpose.msra.mxu0 0.0
        %578 = vmatprep.subr.mxu0 0.0
        %579 = vmatpush1.xpose.msra.mxu0 0.0
        %580 = vmatprep.subr.mxu0 0.0
        %581 = vmatpush1.xpose.msra.mxu0 0.0
        %582 = vmatprep.subr.mxu0 0.0
        %583 = vmatpush1.xpose.msra.mxu0 0.0
        %584 = vmatprep.subr.mxu0 0.0
        %585 = vmatpush1.xpose.msra.mxu0 0.0
        %586 = vmatprep.subr.mxu0 0.0
        %587 = vmatpush1.xpose.msra.mxu0 0.0
        %588 = vmatprep.mubr.f32.mxu0 0.0
        %589 = vmatmul.mubr.f32.gmra.mrb[0].mxu0 %v520
        %v590 = vpop.f32.mrb[0].mxu0
        %v591 = vadd.f32 0.0, %v590
        %v592 = vpop.f32.mrb[0].mxu0
        %593 = vdwg.mxu0
        %v594 = vpow.f32 %v591, 0.35355338
        %s595 = scalar_lea.vmem [#allocation2], 16
        %596 = vst.msk [vmem:[%s595] sm:$0xff] %vm358, %v594
        %597 = vrot.lane.b32.xlu0 %v352, 104
        %v598 = vpop.permute.xlu0 %597
        %599 = vrot.lane.b32.xlu0 %v352, 72
        %v600 = vpop.permute.xlu0 %599
        %v601 = vsel %vm358, %v598, 0
        %v603 = vsel %vm358, %v600, 0
        %605 = vmatprep.subr.mxu0 0.0
        %606 = vmatpush1.xpose.msra.mxu0 %v603
        %607 = vmatprep.subr.mxu0 0.0
        %608 = vmatpush1.xpose.msra.mxu0 0.0
        %609 = vmatprep.subr.mxu0 0.0
        %610 = vmatpush1.xpose.msra.mxu0 0.0
        %611 = vmatprep.subr.mxu0 0.0
        %612 = vmatpush1.xpose.msra.mxu0 0.0
        %613 = vmatprep.subr.mxu0 0.0
        %614 = vmatpush1.xpose.msra.mxu0 0.0
        %615 = vmatprep.subr.mxu0 0.0
        %616 = vmatpush1.xpose.msra.mxu0 0.0
        %617 = vmatprep.subr.mxu0 0.0
        %618 = vmatpush1.xpose.msra.mxu0 0.0
        %619 = vmatprep.subr.mxu0 0.0
        %620 = vmatpush1.xpose.msra.mxu0 0.0
        %621 = vmatprep.subr.mxu0 0.0
        %622 = vmatpush1.xpose.msra.mxu0 0.0
        %623 = vmatprep.subr.mxu0 0.0
        %624 = vmatpush1.xpose.msra.mxu0 0.0
        %625 = vmatprep.subr.mxu0 0.0
        %626 = vmatpush1.xpose.msra.mxu0 0.0
        %627 = vmatprep.subr.mxu0 0.0
        %628 = vmatpush1.xpose.msra.mxu0 0.0
        %629 = vmatprep.subr.mxu0 0.0
        %630 = vmatpush1.xpose.msra.mxu0 0.0
        %631 = vmatprep.subr.mxu0 0.0
        %632 = vmatpush1.xpose.msra.mxu0 0.0
        %633 = vmatprep.subr.mxu0 0.0
        %634 = vmatpush1.xpose.msra.mxu0 0.0
        %635 = vmatprep.subr.mxu0 0.0
        %636 = vmatpush1.xpose.msra.mxu0 0.0
        %637 = vmatprep.subr.mxu0 0.0
        %638 = vmatpush1.xpose.msra.mxu0 0.0
        %639 = vmatprep.subr.mxu0 0.0
        %640 = vmatpush1.xpose.msra.mxu0 0.0
        %641 = vmatprep.subr.mxu0 0.0
        %642 = vmatpush1.xpose.msra.mxu0 0.0
        %643 = vmatprep.subr.mxu0 0.0
        %644 = vmatpush1.xpose.msra.mxu0 0.0
        %645 = vmatprep.subr.mxu0 0.0
        %646 = vmatpush1.xpose.msra.mxu0 0.0
        %647 = vmatprep.subr.mxu0 0.0
        %648 = vmatpush1.xpose.msra.mxu0 0.0
        %649 = vmatprep.subr.mxu0 0.0
        %650 = vmatpush1.xpose.msra.mxu0 0.0
        %651 = vmatprep.subr.mxu0 0.0
        %652 = vmatpush1.xpose.msra.mxu0 0.0
        %653 = vmatprep.subr.mxu0 0.0
        %654 = vmatpush1.xpose.msra.mxu0 0.0
        %655 = vmatprep.subr.mxu0 0.0
        %656 = vmatpush1.xpose.msra.mxu0 0.0
        %657 = vmatprep.subr.mxu0 0.0
        %658 = vmatpush1.xpose.msra.mxu0 0.0
        %659 = vmatprep.subr.mxu0 0.0
        %660 = vmatpush1.xpose.msra.mxu0 0.0
        %661 = vmatprep.subr.mxu0 0.0
        %662 = vmatpush1.xpose.msra.mxu0 0.0
        %663 = vmatprep.subr.mxu0 0.0
        %664 = vmatpush1.xpose.msra.mxu0 0.0
        %665 = vmatprep.subr.mxu0 0.0
        %666 = vmatpush1.xpose.msra.mxu0 0.0
        %667 = vmatprep.subr.mxu0 0.0
        %668 = vmatpush1.xpose.msra.mxu0 0.0
        %669 = vmatprep.mubr.f32.mxu0 0.0
        %670 = vmatmul.mubr.f32.gmra.mrb[0].mxu0 %v601
        %v671 = vpop.f32.mrb[0].mxu0
        %v672 = vadd.f32 0.0, %v671
        %v673 = vpop.f32.mrb[0].mxu0
        %674 = vdwg.mxu0
        %v675 = vpow.f32 %v672, 0.35355338
        %s676 = scalar_lea.vmem [#allocation2], 24
        %677 = vst.msk [vmem:[%s676] sm:$0xff] %vm358, %v675
        %v678 = vld [vmem:[#allocation2] sm:$0xff]
        %v679 = vld [vmem:[#allocation2 + $0x8] sm:$0xff]
        %v680 = vld [vmem:[#allocation2 + $0x10] sm:$0xff]
        %v681 = vld [vmem:[#allocation2 + $0x18] sm:$0xff]
        %v682 = vsel %vm358, %v678, -inf
        %v683 = vsel %vm358, %v679, -inf
        %v684 = vsel %vm358, %v680, -inf
        %v685 = vsel %vm358, %v681, -inf
        %v686 = vmax.f32 %v682, %v683
        %v687 = vmax.f32 %v684, %v685
        %v688 = vmax.f32 %v686, %v687
        %v689 = vsub.f32 %v678, %v688
        %v690 = vsub.f32 %v679, %v688
        %v691 = vsub.f32 %v680, %v688
        %v692 = vsub.f32 %v681, %v688
        %v693 = vmul.f32 %v689, 1.442695
        %v694 = vpow.pop %v693
        %v695 = vmul.f32 %v690, 1.442695
        %v696 = vpow.pop %v695
        %v697 = vmul.f32 %v691, 1.442695
        %v698 = vpow.pop %v697
        %v699 = vmul.f32 %v692, 1.442695
        %v700 = vpow.pop %v699
        %v701 = vsel %vm358, %v694, 0.0
        %v702 = vsel %vm358, %v696, 0.0
        %v703 = vadd.f32 %v701, %v702
        %v704 = vsel %vm358, %v698, 0.0
        %v705 = vadd.f32 %v703, %v704
        %v706 = vsel %vm358, %v700, 0.0
        %v707 = vadd.f32 %v705, %v706
        %v708 = vrcp.pop %v707
        %v709 = vmul.f32 %v694, %v708
        %v710 = vmul.f32 %v696, %v708
        %v711 = vmul.f32 %v698, %v708
        %v712 = vmul.f32 %v700, %v708
        %713 = vrot.lane.b32.xlu0 %v352, 64
        %v714 = vpop.permute.xlu0 %713
        %v717 = vsel %vm358, %v709, 0
        %719 = vmatprep.subr.mxu0 0.0
        %720 = vmatpush1.msra.mxu0 %v714
        %721 = vmatprep.subr.mxu0 0.0
        %722 = vmatpush1.msra.mxu0 0.0
        %723 = vmatprep.subr.mxu0 0.0
        %724 = vmatpush1.msra.mxu0 0.0
        %725 = vmatprep.subr.mxu0 0.0
        %726 = vmatpush1.msra.mxu0 0.0
        %727 = vmatprep.subr.mxu0 0.0
        %728 = vmatpush1.msra.mxu0 0.0
        %729 = vmatprep.subr.mxu0 0.0
        %730 = vmatpush1.msra.mxu0 0.0
        %731 = vmatprep.subr.mxu0 0.0
        %732 = vmatpush1.msra.mxu0 0.0
        %733 = vmatprep.subr.mxu0 0.0
        %734 = vmatpush1.msra.mxu0 0.0
        %735 = vmatprep.subr.mxu0 0.0
        %736 = vmatpush1.msra.mxu0 0.0
        %737 = vmatprep.subr.mxu0 0.0
        %738 = vmatpush1.msra.mxu0 0.0
        %739 = vmatprep.subr.mxu0 0.0
        %740 = vmatpush1.msra.mxu0 0.0
        %741 = vmatprep.subr.mxu0 0.0
        %742 = vmatpush1.msra.mxu0 0.0
        %743 = vmatprep.subr.mxu0 0.0
        %744 = vmatpush1.msra.mxu0 0.0
        %745 = vmatprep.subr.mxu0 0.0
        %746 = vmatpush1.msra.mxu0 0.0
        %747 = vmatprep.subr.mxu0 0.0
        %748 = vmatpush1.msra.mxu0 0.0
        %749 = vmatprep.subr.mxu0 0.0
        %750 = vmatpush1.msra.mxu0 0.0
        %751 = vmatprep.subr.mxu0 0.0
        %752 = vmatpush1.msra.mxu0 0.0
        %753 = vmatprep.subr.mxu0 0.0
        %754 = vmatpush1.msra.mxu0 0.0
        %755 = vmatprep.subr.mxu0 0.0
        %756 = vmatpush1.msra.mxu0 0.0
        %757 = vmatprep.subr.mxu0 0.0
        %758 = vmatpush1.msra.mxu0 0.0
        %759 = vmatprep.subr.mxu0 0.0
        %760 = vmatpush1.msra.mxu0 0.0
        %761 = vmatprep.subr.mxu0 0.0
        %762 = vmatpush1.msra.mxu0 0.0
        %763 = vmatprep.subr.mxu0 0.0
        %764 = vmatpush1.msra.mxu0 0.0
        %765 = vmatprep.subr.mxu0 0.0
        %766 = vmatpush1.msra.mxu0 0.0
        %767 = vmatprep.subr.mxu0 0.0
        %768 = vmatpush1.msra.mxu0 0.0
        %769 = vmatprep.subr.mxu0 0.0
        %770 = vmatpush1.msra.mxu0 0.0
        %771 = vmatprep.subr.mxu0 0.0
        %772 = vmatpush1.msra.mxu0 0.0
        %773 = vmatprep.subr.mxu0 0.0
        %774 = vmatpush1.msra.mxu0 0.0
        %775 = vmatprep.subr.mxu0 0.0
        %776 = vmatpush1.msra.mxu0 0.0
        %777 = vmatprep.subr.mxu0 0.0
        %778 = vmatpush1.msra.mxu0 0.0
        %779 = vmatprep.subr.mxu0 0.0
        %780 = vmatpush1.msra.mxu0 0.0
        %781 = vmatprep.subr.mxu0 0.0
        %782 = vmatpush1.msra.mxu0 0.0
        %783 = vmatprep.mubr.f32.mxu0 0.0
        %784 = vmatmul.mubr.f32.gmra.mrb[0].mxu0 %v717
        %v785 = vpop.f32.mrb[0].mxu0
        %v786 = vadd.f32 0.0, %v785
        %v787 = vpop.f32.mrb[0].mxu0
        %788 = vdwg.mxu0
        %789 = vst.msk [vmem:[#allocation3] sm:$0xff] %vm358, %v786
        %790 = vrot.lane.b32.xlu0 %v352, 56
        %v791 = vpop.permute.xlu0 %790
        %v794 = vsel %vm358, %v710, 0
        %796 = vmatprep.subr.mxu0 0.0
        %797 = vmatpush1.msra.mxu0 %v791
        %798 = vmatprep.subr.mxu0 0.0
        %799 = vmatpush1.msra.mxu0 0.0
        %800 = vmatprep.subr.mxu0 0.0
        %801 = vmatpush1.msra.mxu0 0.0
        %802 = vmatprep.subr.mxu0 0.0
        %803 = vmatpush1.msra.mxu0 0.0
        %804 = vmatprep.subr.mxu0 0.0
        %805 = vmatpush1.msra.mxu0 0.0
        %806 = vmatprep.subr.mxu0 0.0
        %807 = vmatpush1.msra.mxu0 0.0
        %808 = vmatprep.subr.mxu0 0.0
        %809 = vmatpush1.msra.mxu0 0.0
        %810 = vmatprep.subr.mxu0 0.0
        %811 = vmatpush1.msra.mxu0 0.0
        %812 = vmatprep.subr.mxu0 0.0
        %813 = vmatpush1.msra.mxu0 0.0
        %814 = vmatprep.subr.mxu0 0.0
        %815 = vmatpush1.msra.mxu0 0.0
        %816 = vmatprep.subr.mxu0 0.0
        %817 = vmatpush1.msra.mxu0 0.0
        %818 = vmatprep.subr.mxu0 0.0
        %819 = vmatpush1.msra.mxu0 0.0
        %820 = vmatprep.subr.mxu0 0.0
        %821 = vmatpush1.msra.mxu0 0.0
        %822 = vmatprep.subr.mxu0 0.0
        %823 = vmatpush1.msra.mxu0 0.0
        %824 = vmatprep.subr.mxu0 0.0
        %825 = vmatpush1.msra.mxu0 0.0
        %826 = vmatprep.subr.mxu0 0.0
        %827 = vmatpush1.msra.mxu0 0.0
        %828 = vmatprep.subr.mxu0 0.0
        %829 = vmatpush1.msra.mxu0 0.0
        %830 = vmatprep.subr.mxu0 0.0
        %831 = vmatpush1.msra.mxu0 0.0
        %832 = vmatprep.subr.mxu0 0.0
        %833 = vmatpush1.msra.mxu0 0.0
        %834 = vmatprep.subr.mxu0 0.0
        %835 = vmatpush1.msra.mxu0 0.0
        %836 = vmatprep.subr.mxu0 0.0
        %837 = vmatpush1.msra.mxu0 0.0
        %838 = vmatprep.subr.mxu0 0.0
        %839 = vmatpush1.msra.mxu0 0.0
        %840 = vmatprep.subr.mxu0 0.0
        %841 = vmatpush1.msra.mxu0 0.0
        %842 = vmatprep.subr.mxu0 0.0
        %843 = vmatpush1.msra.mxu0 0.0
        %844 = vmatprep.subr.mxu0 0.0
        %845 = vmatpush1.msra.mxu0 0.0
        %846 = vmatprep.subr.mxu0 0.0
        %847 = vmatpush1.msra.mxu0 0.0
        %848 = vmatprep.subr.mxu0 0.0
        %849 = vmatpush1.msra.mxu0 0.0
        %850 = vmatprep.subr.mxu0 0.0
        %851 = vmatpush1.msra.mxu0 0.0
        %852 = vmatprep.subr.mxu0 0.0
        %853 = vmatpush1.msra.mxu0 0.0
        %854 = vmatprep.subr.mxu0 0.0
        %855 = vmatpush1.msra.mxu0 0.0
        %856 = vmatprep.subr.mxu0 0.0
        %857 = vmatpush1.msra.mxu0 0.0
        %858 = vmatprep.subr.mxu0 0.0
        %859 = vmatpush1.msra.mxu0 0.0
        %860 = vmatprep.mubr.f32.mxu0 0.0
        %861 = vmatmul.mubr.f32.gmra.mrb[0].mxu0 %v794
        %v862 = vpop.f32.mrb[0].mxu0
        %v863 = vadd.f32 0.0, %v862
        %v864 = vpop.f32.mrb[0].mxu0
        %865 = vdwg.mxu0
        %867 = vrot.lane.b32.xlu0 %v863, 8
        %v868 = vpop.permute.xlu0 %867
        %vm870 = vcmask 130112
        %871 = vst.msk [vmem:[#allocation3] sm:$0xff] %vm870, %v868
        %872 = vrot.lane.b32.xlu0 %v352, 48
        %v873 = vpop.permute.xlu0 %872
        %v876 = vsel %vm358, %v711, 0
        %878 = vmatprep.subr.mxu0 0.0
        %879 = vmatpush1.msra.mxu0 %v873
        %880 = vmatprep.subr.mxu0 0.0
        %881 = vmatpush1.msra.mxu0 0.0
        %882 = vmatprep.subr.mxu0 0.0
        %883 = vmatpush1.msra.mxu0 0.0
        %884 = vmatprep.subr.mxu0 0.0
        %885 = vmatpush1.msra.mxu0 0.0
        %886 = vmatprep.subr.mxu0 0.0
        %887 = vmatpush1.msra.mxu0 0.0
        %888 = vmatprep.subr.mxu0 0.0
        %889 = vmatpush1.msra.mxu0 0.0
        %890 = vmatprep.subr.mxu0 0.0
        %891 = vmatpush1.msra.mxu0 0.0
        %892 = vmatprep.subr.mxu0 0.0
        %893 = vmatpush1.msra.mxu0 0.0
        %894 = vmatprep.subr.mxu0 0.0
        %895 = vmatpush1.msra.mxu0 0.0
        %896 = vmatprep.subr.mxu0 0.0
        %897 = vmatpush1.msra.mxu0 0.0
        %898 = vmatprep.subr.mxu0 0.0
        %899 = vmatpush1.msra.mxu0 0.0
        %900 = vmatprep.subr.mxu0 0.0
        %901 = vmatpush1.msra.mxu0 0.0
        %902 = vmatprep.subr.mxu0 0.0
        %903 = vmatpush1.msra.mxu0 0.0
        %904 = vmatprep.subr.mxu0 0.0
        %905 = vmatpush1.msra.mxu0 0.0
        %906 = vmatprep.subr.mxu0 0.0
        %907 = vmatpush1.msra.mxu0 0.0
        %908 = vmatprep.subr.mxu0 0.0
        %909 = vmatpush1.msra.mxu0 0.0
        %910 = vmatprep.subr.mxu0 0.0
        %911 = vmatpush1.msra.mxu0 0.0
        %912 = vmatprep.subr.mxu0 0.0
        %913 = vmatpush1.msra.mxu0 0.0
        %914 = vmatprep.subr.mxu0 0.0
        %915 = vmatpush1.msra.mxu0 0.0
        %916 = vmatprep.subr.mxu0 0.0
        %917 = vmatpush1.msra.mxu0 0.0
        %918 = vmatprep.subr.mxu0 0.0
        %919 = vmatpush1.msra.mxu0 0.0
        %920 = vmatprep.subr.mxu0 0.0
        %921 = vmatpush1.msra.mxu0 0.0
        %922 = vmatprep.subr.mxu0 0.0
        %923 = vmatpush1.msra.mxu0 0.0
        %924 = vmatprep.subr.mxu0 0.0
        %925 = vmatpush1.msra.mxu0 0.0
        %926 = vmatprep.subr.mxu0 0.0
        %927 = vmatpush1.msra.mxu0 0.0
        %928 = vmatprep.subr.mxu0 0.0
        %929 = vmatpush1.msra.mxu0 0.0
        %930 = vmatprep.subr.mxu0 0.0
        %931 = vmatpush1.msra.mxu0 0.0
        %932 = vmatprep.subr.mxu0 0.0
        %933 = vmatpush1.msra.mxu0 0.0
        %934 = vmatprep.subr.mxu0 0.0
        %935 = vmatpush1.msra.mxu0 0.0
        %936 = vmatprep.subr.mxu0 0.0
        %937 = vmatpush1.msra.mxu0 0.0
        %938 = vmatprep.subr.mxu0 0.0
        %939 = vmatpush1.msra.mxu0 0.0
        %940 = vmatprep.subr.mxu0 0.0
        %941 = vmatpush1.msra.mxu0 0.0
        %942 = vmatprep.mubr.f32.mxu0 0.0
        %943 = vmatmul.mubr.f32.gmra.mrb[0].mxu0 %v876
        %v944 = vpop.f32.mrb[0].mxu0
        %v945 = vadd.f32 0.0, %v944
        %v946 = vpop.f32.mrb[0].mxu0
        %947 = vdwg.mxu0
        %949 = vrot.lane.b32.xlu0 %v945, 16
        %v950 = vpop.permute.xlu0 %949
        %vm952 = vcmask 195712
        %953 = vst.msk [vmem:[#allocation3] sm:$0xff] %vm952, %v950
        %954 = vrot.lane.b32.xlu0 %v352, 40
        %v955 = vpop.permute.xlu0 %954
        %v958 = vsel %vm358, %v712, 0
        %960 = vmatprep.subr.mxu0 0.0
        %961 = vmatpush1.msra.mxu0 %v955
        %962 = vmatprep.subr.mxu0 0.0
        %963 = vmatpush1.msra.mxu0 0.0
        %964 = vmatprep.subr.mxu0 0.0
        %965 = vmatpush1.msra.mxu0 0.0
        %966 = vmatprep.subr.mxu0 0.0
        %967 = vmatpush1.msra.mxu0 0.0
        %968 = vmatprep.subr.mxu0 0.0
        %969 = vmatpush1.msra.mxu0 0.0
        %970 = vmatprep.subr.mxu0 0.0
        %971 = vmatpush1.msra.mxu0 0.0
        %972 = vmatprep.subr.mxu0 0.0
        %973 = vmatpush1.msra.mxu0 0.0
        %974 = vmatprep.subr.mxu0 0.0
        %975 = vmatpush1.msra.mxu0 0.0
        %976 = vmatprep.subr.mxu0 0.0
        %977 = vmatpush1.msra.mxu0 0.0
        %978 = vmatprep.subr.mxu0 0.0
        %979 = vmatpush1.msra.mxu0 0.0
        %980 = vmatprep.subr.mxu0 0.0
        %981 = vmatpush1.msra.mxu0 0.0
        %982 = vmatprep.subr.mxu0 0.0
        %983 = vmatpush1.msra.mxu0 0.0
        %984 = vmatprep.subr.mxu0 0.0
        %985 = vmatpush1.msra.mxu0 0.0
        %986 = vmatprep.subr.mxu0 0.0
        %987 = vmatpush1.msra.mxu0 0.0
        %988 = vmatprep.subr.mxu0 0.0
        %989 = vmatpush1.msra.mxu0 0.0
        %990 = vmatprep.subr.mxu0 0.0
        %991 = vmatpush1.msra.mxu0 0.0
        %992 = vmatprep.subr.mxu0 0.0
        %993 = vmatpush1.msra.mxu0 0.0
        %994 = vmatprep.subr.mxu0 0.0
        %995 = vmatpush1.msra.mxu0 0.0
        %996 = vmatprep.subr.mxu0 0.0
        %997 = vmatpush1.msra.mxu0 0.0
        %998 = vmatprep.subr.mxu0 0.0
        %999 = vmatpush1.msra.mxu0 0.0
        %1000 = vmatprep.subr.mxu0 0.0
        %1001 = vmatpush1.msra.mxu0 0.0
        %1002 = vmatprep.subr.mxu0 0.0
        %1003 = vmatpush1.msra.mxu0 0.0
        %1004 = vmatprep.subr.mxu0 0.0
        %1005 = vmatpush1.msra.mxu0 0.0
        %1006 = vmatprep.subr.mxu0 0.0
        %1007 = vmatpush1.msra.mxu0 0.0
        %1008 = vmatprep.subr.mxu0 0.0
        %1009 = vmatpush1.msra.mxu0 0.0
        %1010 = vmatprep.subr.mxu0 0.0
        %1011 = vmatpush1.msra.mxu0 0.0
        %1012 = vmatprep.subr.mxu0 0.0
        %1013 = vmatpush1.msra.mxu0 0.0
        %1014 = vmatprep.subr.mxu0 0.0
        %1015 = vmatpush1.msra.mxu0 0.0
        %1016 = vmatprep.subr.mxu0 0.0
        %1017 = vmatpush1.msra.mxu0 0.0
        %1018 = vmatprep.subr.mxu0 0.0
        %1019 = vmatpush1.msra.mxu0 0.0
        %1020 = vmatprep.subr.mxu0 0.0
        %1021 = vmatpush1.msra.mxu0 0.0
        %1022 = vmatprep.subr.mxu0 0.0
        %1023 = vmatpush1.msra.mxu0 0.0
        %1024 = vmatprep.mubr.f32.mxu0 0.0
        %1025 = vmatmul.mubr.f32.gmra.mrb[0].mxu0 %v958
        %v1026 = vpop.f32.mrb[0].mxu0
        %v1027 = vadd.f32 0.0, %v1026
        %v1028 = vpop.f32.mrb[0].mxu0
        %1029 = vdwg.mxu0
        %1031 = vrot.lane.b32.xlu0 %v1027, 24
        %v1032 = vpop.permute.xlu0 %1031
        %vm1034 = vcmask 261312
        %1035 = vst.msk [vmem:[#allocation3] sm:$0xff] %vm1034, %v1032
        %v1036 = vld [vmem:[#allocation3] sm:$0xff]
        %v1037 = vld [vmem:[#allocation9] sm:$0xff]
        %v1038 = vld [vmem:[#allocation9 + $0x8] sm:$0xff]
        %v1039 = vld [vmem:[#allocation9 + $0x10] sm:$0xff]
        %v1040 = vld [vmem:[#allocation9 + $0x18] sm:$0xff]
        %v1041 = vld [vmem:[%s4] sm:$0x1]
        %v1043 = vlaneseq
        %v1044 = vshrl.u32 %v1043, 7
        %v1045 = vsub.s32 0, %v1044
        %v1046 = vrot.slane %v1041, %v1045
        %v1049 = vsel %vm281, %v1036, 0
        %1051 = vmatprep.subr.mxu0 0.0
        %1052 = vmatpush1.msra.mxu0 %v1037
        %1053 = vmatprep.subr.mxu0 0.0
        %1054 = vmatpush1.msra.mxu0 %v1038
        %1055 = vmatprep.subr.mxu0 0.0
        %1056 = vmatpush1.msra.mxu0 %v1039
        %1057 = vmatprep.subr.mxu0 0.0
        %1058 = vmatpush1.msra.mxu0 %v1040
        %1059 = vmatprep.subr.mxu0 0.0
        %1060 = vmatpush1.msra.mxu0 0.0
        %1061 = vmatprep.subr.mxu0 0.0
        %1062 = vmatpush1.msra.mxu0 0.0
        %1063 = vmatprep.subr.mxu0 0.0
        %1064 = vmatpush1.msra.mxu0 0.0
        %1065 = vmatprep.subr.mxu0 0.0
        %1066 = vmatpush1.msra.mxu0 0.0
        %1067 = vmatprep.subr.mxu0 0.0
        %1068 = vmatpush1.msra.mxu0 0.0
        %1069 = vmatprep.subr.mxu0 0.0
        %1070 = vmatpush1.msra.mxu0 0.0
        %1071 = vmatprep.subr.mxu0 0.0
        %1072 = vmatpush1.msra.mxu0 0.0
        %1073 = vmatprep.subr.mxu0 0.0
        %1074 = vmatpush1.msra.mxu0 0.0
        %1075 = vmatprep.subr.mxu0 0.0
        %1076 = vmatpush1.msra.mxu0 0.0
        %1077 = vmatprep.subr.mxu0 0.0
        %1078 = vmatpush1.msra.mxu0 0.0
        %1079 = vmatprep.subr.mxu0 0.0
        %1080 = vmatpush1.msra.mxu0 0.0
        %1081 = vmatprep.subr.mxu0 0.0
        %1082 = vmatpush1.msra.mxu0 0.0
        %1083 = vmatprep.subr.mxu0 0.0
        %1084 = vmatpush1.msra.mxu0 0.0
        %1085 = vmatprep.subr.mxu0 0.0
        %1086 = vmatpush1.msra.mxu0 0.0
        %1087 = vmatprep.subr.mxu0 0.0
        %1088 = vmatpush1.msra.mxu0 0.0
        %1089 = vmatprep.subr.mxu0 0.0
        %1090 = vmatpush1.msra.mxu0 0.0
        %1091 = vmatprep.subr.mxu0 0.0
        %1092 = vmatpush1.msra.mxu0 0.0
        %1093 = vmatprep.subr.mxu0 0.0
        %1094 = vmatpush1.msra.mxu0 0.0
        %1095 = vmatprep.subr.mxu0 0.0
        %1096 = vmatpush1.msra.mxu0 0.0
        %1097 = vmatprep.subr.mxu0 0.0
        %1098 = vmatpush1.msra.mxu0 0.0
        %1099 = vmatprep.subr.mxu0 0.0
        %1100 = vmatpush1.msra.mxu0 0.0
        %1101 = vmatprep.subr.mxu0 0.0
        %1102 = vmatpush1.msra.mxu0 0.0
        %1103 = vmatprep.subr.mxu0 0.0
        %1104 = vmatpush1.msra.mxu0 0.0
        %1105 = vmatprep.subr.mxu0 0.0
        %1106 = vmatpush1.msra.mxu0 0.0
        %1107 = vmatprep.subr.mxu0 0.0
        %1108 = vmatpush1.msra.mxu0 0.0
        %1109 = vmatprep.subr.mxu0 0.0
        %1110 = vmatpush1.msra.mxu0 0.0
        %1111 = vmatprep.subr.mxu0 0.0
        %1112 = vmatpush1.msra.mxu0 0.0
        %1113 = vmatprep.subr.mxu0 0.0
        %1114 = vmatpush1.msra.mxu0 0.0
        %1115 = vmatprep.mubr.f32.mxu0 0.0
        %1116 = vmatmul.mubr.f32.gmra.mrb[0].mxu0 %v1049
        %v1117 = vpop.f32.mrb[0].mxu0
        %v1118 = vadd.f32 %v1046, %v1117
        %v1119 = vpop.f32.mrb[0].mxu0
        %1120 = vdwg.mxu0
        %1121 = vst.msk [vmem:[%s268] sm:$0xff] %vm281, %v1118
        %s1122 = sand.u32 %s141, 1
        %s1123 = scalar_lea.sflag [#allocation6], %s1122
        %s1124 = sand.u32 %s141, 1
        %s1125 = smul.addr %s1124, 8
        %s1126 = scalar_lea.vmem [#allocation10], %s1125
        // Predicated region
        $region53: #{tpu_custom_call.1} parent=39 // pred_check
          %p1127 = pneg %p151
        $region54: #{tpu_custom_call.1} parent=39 // pred_check_branch
          %1129 = sbr.rel (%p1127) target = $region56
        $region55: #{tpu_custom_call.1} parent=39 // pred_region
          %s1131 = ssub.s32 128, 128
          %1132 = vsyncadd %s1123, %s1131
          %s1133 = smul.addr %s23, 128
          %s1134 = scalar_lea.hbm %s5, %s1133
          %s1136 = sshll.u32 %s1126, 4
          %s1137 = int_to_ptr.vmem [resolvable:$true] %s1136
          %1139 = dma.vmem_to_hbm [thread:$0]  %s1137, 128, %s1134, %s1123
        $region56: #{tpu_custom_call.1} parent=39 // pred_fallthru
          _
      $region40: #{tpu_custom_call.1} parent=5 // pred_fallthru
        _
      %p1140 = scmp.le.s32.totalorder 2, %s18
      // Predicated region
      $region57: #{tpu_custom_call.1} parent=5 // pred_check
        %p1141 = pneg %p1140
      $region58: #{tpu_custom_call.1} parent=5 // pred_check_branch
        %1143 = sbr.rel (%p1141) target = $region60
      $region59: #{tpu_custom_call.1} parent=5 // pred_region
        %s1144 = ssub.s32 %s18, 2
        // Predicated region
        $region61: #{tpu_custom_call.1} parent=59 // pred_check
          %p1145 = pneg %p157
        $region62: #{tpu_custom_call.1} parent=59 // pred_check_branch
          %1147 = sbr.rel (%p1145) target = $region64
        $region63: #{tpu_custom_call.1} parent=59 // pred_region
          %s1148 = sand.u32 %s142, 1
          %s1149 = scalar_lea.sflag [#allocation6], %s1148
          %s1150 = sand.u32 %s142, 1
          %s1151 = smul.addr %s1150, 8
          %s1152 = scalar_lea.vmem [#allocation10], %s1151
          %1153 = dma.done %s1149, 128
        $region64: #{tpu_custom_call.1} parent=59 // pred_fallthru
          _
      $region60: #{tpu_custom_call.1} parent=5 // pred_fallthru
        _
    $region6: #{tpu_custom_call.1} parent=1 // loop_footer
      %s22 = sadd.s32 1, %s18
    $region7: #{tpu_custom_call.1} parent=1 // loop_footer_branch
      %17 = sbr.rel target = $region3
    $region8: #{tpu_custom_call.1} parent=1 // loop_exit
      _
    %1154 = vsyncpa [#allocation5], 1
    %s1155 = scalar_lea.sflag [#allocation5], 1
    %1156 = vsyncpa %s1155, 1
    %1157 = vsyncpa [#allocation8], 1
    %1158 = vsyncpa [#allocation6], 1
    %s1159 = scalar_lea.sflag [#allocation6], 1
    %1160 = vsyncpa %s1159, 1

// kernel: tpu_custom_call.1
$region0: #{tpu_custom_call.1}
  #allocation0 [shape = 'u32[]', space=smem, size = 0x4, offset = 0x4, fixed_abs, tag = 'smem constant byte address 0x4 - core index']
  #allocation1 [shape = 'u32[144,128]{1,0:T(1,128)}', space=vmem, size = 0x12000, scoped, tag = 'internal scratch']
  #allocation2 [shape = 'f32[4,8,8]{2,1,0:T(8,128)}', space=vmem, size = 0x4000, scoped, tag = 'scratch operand']
  #allocation3 [shape = 'f32[8,32]{1,0:T(8,128)}', space=vmem, size = 0x1000, scoped, tag = 'scratch operand']
  %s0 = inlined_call_operand.hbm [shape: f32[16,32], index: 0, kind: input, shape index: {}]
  %s1 = inlined_call_operand.hbm [shape: f32[32,96], index: 1, kind: input, shape index: {}]
  %s2 = inlined_call_operand.vmem [shape: f32[1,96], index: 2, kind: input, shape index: {}]
  %s3 = inlined_call_operand.hbm [shape: f32[32,32], index: 3, kind: input, shape index: {}]
  %s4 = inlined_call_operand.vmem [shape: f32[1,32], index: 4, kind: input, shape index: {}]
  %s5 = inlined_call_operand.hbm [shape: f32[16,32], index: 5, kind: output, shape index: {}]
  %s6 = sld [smem:[#allocation0]]
  $region65: #{tpu_custom_call.1} parent=0
    _
  %s8 = ssub.s32 1, %s6
  %s9 = scalar_select 0, %s8, %s6
  $region1: #{tpu_custom_call.1} parent=0
    #allocation4 [shape = 'u8[8192]{0}', space=vmem, size = 0x2000, scoped, tag = 'input window, operand 0']
    #allocation5 [shape = 's32[2]{0}', space=sflag, size = 0x8, scoped, tag = 'scoped memory for tpu_custom_call.1']
    #allocation6 [shape = 's32[2]{0}', space=sflag, size = 0x8, scoped, tag = 'scoped memory for tpu_custom_call.1']
    #allocation7 [shape = 'u8[16384]{0}', space=vmem, size = 0x4000, scoped, tag = 'input window, operand 1, single buffered']
    #allocation8 [shape = 's32[1]{0}', space=sflag, size = 0x4, scoped, tag = 'scoped memory for tpu_custom_call.1']
    #allocation9 [shape = 'u8[16384]{0}', space=vmem, size = 0x4000, scoped, tag = 'input window, operand 3, single buffered']
    #allocation10 [shape = 'u8[8192]{0}', space=vmem, size = 0x2000, scoped, tag = 'output window, operand 0']
    %10 = vsyncpa [#allocation5], 0
    %s11 = scalar_lea.sflag [#allocation5], 1
    %12 = vsyncpa %s11, 0
    %13 = vsyncpa [#allocation8], 0
    %14 = vsyncpa [#allocation6], 0
    %s15 = scalar_lea.sflag [#allocation6], 1
    %16 = vsyncpa %s15, 0
    loop: start=0, step=1, limit=4
    $region2: #{tpu_custom_call.1} parent=1 // loop_pre_header
      _
    $region3: #{tpu_custom_call.1} parent=1 // loop_header
      %s18 = sphi 0, %s22
      %p19 = scmp.ge.s32.totalorder %s18, 4
      %s28 = sphi 0, %s30
      %s31 = sphi 0, %s28
      %s32 = sphi 0, %s31
      %s48 = sphi 0, %s32
      %s52 = sphi 0, %s52
      %s54 = sphi 0, %s52
      %s55 = sphi 0, %s54
      %s69 = sphi 0, %s55
      %s73 = sphi 0, %s73
      %s75 = sphi 0, %s73
      %s76 = sphi 0, %s75
      %s90 = sphi 0, %s76
      %s94 = sphi 0, %s94
      %s96 = sphi 0, %s94
      %s97 = sphi 0, %s96
      %s111 = sphi 0, %s97
      %s115 = sphi 0, %s115
      %s117 = sphi 0, %s115
      %s118 = sphi 0, %s117
      %s132 = sphi 0, %s118
      %s138 = sphi 0, %s140
      %s141 = sphi 0, %s138
      %s142 = sphi 0, %s141
      %s158 = sphi 0, %s142
    $region4: #{tpu_custom_call.1} parent=1 // loop_header_branch
      %21 = sbr.rel (%p19) target = $region8
    $region5: #{tpu_custom_call.1} parent=1 // loop_body
      %s23 = ssub.s32 %s18, 1
      %s24 = ssub.s32 %s18, 2
      %s25 = sadd.s32 %s18, 1
      %s26 = ssub.s32 %s18, %s25
      %p27 = scmp.eq.s32.totalorder %s26, 0
      %s29 = sadd.s32 %s28, 1
      %s30 = scalar_select %p27, %s28, %s29
      %p33 = pneg %p27
      %p34 = scmp.eq.s32.totalorder %s18, 1
      %p35 = por %p33, %p34
      %p36 = scmp.ne.s32.totalorder %s28, %s31
      %p37 = scmp.eq.s32.totalorder %s18, 0
      %p38 = por %p36, %p37
      %p39 = scmp.ne.s32.totalorder %s28, %s31
      %p40 = scmp.eq.s32.totalorder %s23, 1
      %p41 = por %p39, %p40
      %p42 = scmp.ne.s32.totalorder %s31, %s32
      %p43 = scmp.eq.s32.totalorder %s23, 0
      %p44 = por %p42, %p43
      %p45 = scmp.ne.s32.totalorder %s31, %s32
      %p46 = scmp.eq.s32.totalorder %s24, 1
      %p47 = por %p45, %p46
      %p49 = scmp.ne.s32.totalorder %s32, %s48
      %p50 = scmp.eq.s32.totalorder %s24, 0
      %p51 = por %p49, %p50
      %s53 = sadd.s32 %s52, 1
      %p56 = scmp.eq.s32.totalorder %s18, 1
      %p57 = scmp.ne.s32.totalorder %s52, %s54
      %p58 = scmp.eq.s32.totalorder %s18, 0
      %p59 = por %p57, %p58
      %p60 = scmp.ne.s32.totalorder %s52, %s54
      %p61 = scmp.eq.s32.totalorder %s23, 1
      %p62 = por %p60, %p61
      %p63 = scmp.ne.s32.totalorder %s54, %s55
      %p64 = scmp.eq.s32.totalorder %s23, 0
      %p65 = por %p63, %p64
      %p66 = scmp.ne.s32.totalorder %s54, %s55
      %p67 = scmp.eq.s32.totalorder %s24, 1
      %p68 = por %p66, %p67
      %p70 = scmp.ne.s32.totalorder %s55, %s69
      %p71 = scmp.eq.s32.totalorder %s24, 0
      %p72 = por %p70, %p71
      %s74 = sadd.s32 %s73, 1
      %p77 = scmp.eq.s32.totalorder %s18, 1
      %p78 = scmp.ne.s32.totalorder %s73, %s75
      %p79 = scmp.eq.s32.totalorder %s18, 0
      %p80 = por %p78, %p79
      %p81 = scmp.ne.s32.totalorder %s73, %s75
      %p82 = scmp.eq.s32.totalorder %s23, 1
      %p83 = por %p81, %p82
      %p84 = scmp.ne.s32.totalorder %s75, %s76
      %p85 = scmp.eq.s32.totalorder %s23, 0
      %p86 = por %p84, %p85
      %p87 = scmp.ne.s32.totalorder %s75, %s76
      %p88 = scmp.eq.s32.totalorder %s24, 1
      %p89 = por %p87, %p88
      %p91 = scmp.ne.s32.totalorder %s76, %s90
      %p92 = scmp.eq.s32.totalorder %s24, 0
      %p93 = por %p91, %p92
      %s95 = sadd.s32 %s94, 1
      %p98 = scmp.eq.s32.totalorder %s18, 1
      %p99 = scmp.ne.s32.totalorder %s94, %s96
      %p100 = scmp.eq.s32.totalorder %s18, 0
      %p101 = por %p99, %p100
      %p102 = scmp.ne.s32.totalorder %s94, %s96
      %p103 = scmp.eq.s32.totalorder %s23, 1
      %p104 = por %p102, %p103
      %p105 = scmp.ne.s32.totalorder %s96, %s97
      %p106 = scmp.eq.s32.totalorder %s23, 0
      %p107 = por %p105, %p106
      %p108 = scmp.ne.s32.totalorder %s96, %s97
      %p109 = scmp.eq.s32.totalorder %s24, 1
      %p110 = por %p108, %p109
      %p112 = scmp.ne.s32.totalorder %s97, %s111
      %p113 = scmp.eq.s32.totalorder %s24, 0
      %p114 = por %p112, %p113
      %s116 = sadd.s32 %s115, 1
      %p119 = scmp.eq.s32.totalorder %s18, 1
      %p120 = scmp.ne.s32.totalorder %s115, %s117
      %p121 = scmp.eq.s32.totalorder %s18, 0
      %p122 = por %p120, %p121
      %p123 = scmp.ne.s32.totalorder %s115, %s117
      %p124 = scmp.eq.s32.totalorder %s23, 1
      %p125 = por %p123, %p124
      %p126 = scmp.ne.s32.totalorder %s117, %s118
      %p127 = scmp.eq.s32.totalorder %s23, 0
      %p128 = por %p126, %p127
      %p129 = scmp.ne.s32.totalorder %s117, %s118
      %p130 = scmp.eq.s32.totalorder %s24, 1
      %p131 = por %p129, %p130
      %p133 = scmp.ne.s32.totalorder %s118, %s132
      %p134 = scmp.eq.s32.totalorder %s24, 0
      %p135 = por %p133, %p134
      %s136 = ssub.s32 %s18, %s25
      %p137 = scmp.eq.s32.totalorder %s136, 0
      %s139 = sadd.s32 %s138, 1
      %s140 = scalar_select %p137, %s138, %s139
      %p143 = pneg %p137
      %p144 = scmp.eq.s32.totalorder %s18, 1
      %p145 = por %p143, %p144
      %p146 = scmp.ne.s32.totalorder %s138, %s141
      %p147 = scmp.eq.s32.totalorder %s18, 0
      %p148 = por %p146, %p147
      %p149 = scmp.ne.s32.totalorder %s138, %s141
      %p150 = scmp.eq.s32.totalorder %s23, 1
      %p151 = por %p149, %p150
      %p152 = scmp.ne.s32.totalorder %s141, %s142
      %p153 = scmp.eq.s32.totalorder %s23, 0
      %p154 = por %p152, %p153
      %p155 = scmp.ne.s32.totalorder %s141, %s142
      %p156 = scmp.eq.s32.totalorder %s24, 1
      %p157 = por %p155, %p156
      %p159 = scmp.ne.s32.totalorder %s142, %s158
      %p160 = scmp.eq.s32.totalorder %s24, 0
      %p161 = por %p159, %p160
      %p162 = scmp.le.s32.totalorder 1, %s18
      %p163 = scmp.lt.s32.totalorder %s18, 3
      %p164 = pnand %p162, %p163
      %p165 = pneg %p164
      // Predicated region
      $region9: #{tpu_custom_call.1} parent=5 // pred_check
        _
      $region10: #{tpu_custom_call.1} parent=5 // pred_check_branch
        %167 = sbr.rel (%p164) target = $region12
      $region11: #{tpu_custom_call.1} parent=5 // pred_region
        %s168 = ssub.s32 %s18, 1
        // Predicated region
        $region13: #{tpu_custom_call.1} parent=11 // pred_check
          %p169 = pneg %p65
        $region14: #{tpu_custom_call.1} parent=11 // pred_check_branch
          %171 = sbr.rel (%p169) target = $region16
        $region15: #{tpu_custom_call.1} parent=11 // pred_region
          %s173 = ssub.s32 512, 512
          %174 = vsyncadd [#allocation8], %s173
          %s175 = sshll.u32 [#allocation7], 4
          %s176 = int_to_ptr.vmem [resolvable:$true] %s175
          %181 = dma.hbm_to_vmem [thread:$0]  %s1, 512, %s176, [#allocation8], 128, 128, 8
        $region16: #{tpu_custom_call.1} parent=11 // pred_fallthru
          _
        // Predicated region
        $region17: #{tpu_custom_call.1} parent=11 // pred_check
          %p182 = pneg %p86
        $region18: #{tpu_custom_call.1} parent=11 // pred_check_branch
          %184 = sbr.rel (%p182) target = $region20
        $region19: #{tpu_custom_call.1} parent=11 // pred_region
          _
        $region20: #{tpu_custom_call.1} parent=11 // pred_fallthru
          _
        // Predicated region
        $region21: #{tpu_custom_call.1} parent=11 // pred_check
          %p185 = pneg %p107
        $region22: #{tpu_custom_call.1} parent=11 // pred_check_branch
          %187 = sbr.rel (%p185) target = $region24
        $region23: #{tpu_custom_call.1} parent=11 // pred_region
          %s189 = ssub.s32 512, 512
          %190 = vsyncadd [#allocation8], %s189
          %s191 = sshll.u32 [#allocation9], 4
          %s192 = int_to_ptr.vmem [resolvable:$true] %s191
          %197 = dma.hbm_to_vmem [thread:$0]  %s3, 512, %s192, [#allocation8], 128, 128, 8
        $region24: #{tpu_custom_call.1} parent=11 // pred_fallthru
          _
        // Predicated region
        $region25: #{tpu_custom_call.1} parent=11 // pred_check
          %p198 = pneg %p128
        $region26: #{tpu_custom_call.1} parent=11 // pred_check_branch
          %200 = sbr.rel (%p198) target = $region28
        $region27: #{tpu_custom_call.1} parent=11 // pred_region
          _
        $region28: #{tpu_custom_call.1} parent=11 // pred_fallthru
          _
      $region12: #{tpu_custom_call.1} parent=5 // pred_fallthru
        _
      %p201 = scmp.lt.s32.totalorder %s18, 2
      // Predicated region
      $region29: #{tpu_custom_call.1} parent=5 // pred_check
        %p202 = pneg %p201
      $region30: #{tpu_custom_call.1} parent=5 // pred_check_branch
        %204 = sbr.rel (%p202) target = $region32
      $region31: #{tpu_custom_call.1} parent=5 // pred_region
        // Predicated region
        $region33: #{tpu_custom_call.1} parent=31 // pred_check
          %p205 = pneg %p38
        $region34: #{tpu_custom_call.1} parent=31 // pred_check_branch
          %207 = sbr.rel (%p205) target = $region36
        $region35: #{tpu_custom_call.1} parent=31 // pred_region
          %s208 = sand.u32 %s28, 1
          %s209 = scalar_lea.sflag [#allocation5], %s208
          %s210 = sand.u32 %s28, 1
          %s211 = smul.addr %s210, 8
          %s212 = scalar_lea.vmem [#allocation4], %s211
          %s214 = ssub.s32 128, 128
          %215 = vsyncadd %s209, %s214
          %s216 = smul.addr %s18, 128
          %s217 = scalar_lea.hbm %s0, %s216
          %s219 = sshll.u32 %s212, 4
          %s220 = int_to_ptr.vmem [resolvable:$true] %s219
          %222 = dma.hbm_to_vmem [thread:$0]  %s217, 128, %s220, %s209
        $region36: #{tpu_custom_call.1} parent=31 // pred_fallthru
          _
      $region32: #{tpu_custom_call.1} parent=5 // pred_fallthru
        _
      %p223 = scmp.le.s32.totalorder 1, %s18
      %p224 = scmp.lt.s32.totalorder %s18, 3
      %p225 = pnand %p223, %p224
      %p226 = pneg %p225
      // Predicated region
      $region37: #{tpu_custom_call.1} parent=5 // pred_check
        _
      $region38: #{tpu_custom_call.1} parent=5 // pred_check_branch
        %228 = sbr.rel (%p225) target = $region40
      $region39: #{tpu_custom_call.1} parent=5 // pred_region
        %s229 = ssub.s32 %s18, 1
        %s230 = sand.u32 %s31, 1
        %s231 = scalar_lea.sflag [#allocation5], %s230
        %s232 = sand.u32 %s31, 1
        %s233 = smul.addr %s232, 8
        %s234 = scalar_lea.vmem [#allocation4], %s233
        // Predicated region
        $region41: #{tpu_custom_call.1} parent=39 // pred_check
          %p235 = pneg %p44
        $region42: #{tpu_custom_call.1} parent=39 // pred_check_branch
          %237 = sbr.rel (%p235) target = $region44
        $region43: #{tpu_custom_call.1} parent=39 // pred_region
          %238 = dma.done %s231, 128
        $region44: #{tpu_custom_call.1} parent=39 // pred_fallthru
          _
        // Predicated region
        $region45: #{tpu_custom_call.1} parent=39 // pred_check
          %p239 = pneg %p65
        $region46: #{tpu_custom_call.1} parent=39 // pred_check_branch
          %241 = sbr.rel (%p239) target = $region48
        $region47: #{tpu_custom_call.1} parent=39 // pred_region
          %242 = dma.done [#allocation8], 512
        $region48: #{tpu_custom_call.1} parent=39 // pred_fallthru
          _
        // Predicated region
        $region49: #{tpu_custom_call.1} parent=39 // pred_check
          %p243 = pneg %p107
        $region50: #{tpu_custom_call.1} parent=39 // pred_check_branch
          %245 = sbr.rel (%p243) target = $region52
        $region51: #{tpu_custom_call.1} parent=39 // pred_region
          %246 = dma.done [#allocation8], 512
        $region52: #{tpu_custom_call.1} parent=39 // pred_fallthru
          _
        %s247 = sand.u32 %s31, 1
        %s248 = scalar_lea.sflag [#allocation5], %s247
        %s249 = sand.u32 %s31, 1
        %s250 = smul.addr %s249, 8
        %s251 = scalar_lea.vmem [#allocation4], %s250
        %p252 = pneg %p44
        %p253 = pneg %p41
        %p254 = pneg %p65
        %p255 = pneg %p62
        %p256 = pneg %p86
        %p257 = pneg %p83
        %p258 = pneg %p107
        %p259 = pneg %p104
        %p260 = pneg %p128
        %p261 = pneg %p125
        %p262 = pneg %p154
        %p263 = pneg %p151
        %s264 = sand.u32 %s141, 1
        %s265 = scalar_lea.sflag [#allocation6], %s264
        %s266 = sand.u32 %s141, 1
        %s267 = smul.addr %s266, 8
        %s268 = scalar_lea.vmem [#allocation10], %s267
        %v269 = vld [vmem:[%s234] sm:$0xff]
        %v270 = vld [vmem:[#allocation7] sm:$0xff]
        %v271 = vld [vmem:[#allocation7 + $0x8] sm:$0xff]
        %v272 = vld [vmem:[#allocation7 + $0x10] sm:$0xff]
        %v273 = vld [vmem:[#allocation7 + $0x18] sm:$0xff]
        %v274 = vld [vmem:[%s2] sm:$0x1]
        %v276 = vlaneseq
        %v277 = vshrl.u32 %v276, 7
        %v278 = vsub.s32 0, %v277
        %v279 = vrot.slane %v274, %v278
        %vm281 = vcmask 261120
        %v283 = vsel %vm281, %v269, 0
        %285 = vmatprep.subr.mxu0 0.0
        %286 = vmatpush1.msra.mxu0 %v270
        %287 = vmatprep.subr.mxu0 0.0
        %288 = vmatpush1.msra.mxu0 %v271
        %289 = vmatprep.subr.mxu0 0.0
        %290 = vmatpush1.msra.mxu0 %v272
        %291 = vmatprep.subr.mxu0 0.0
        %292 = vmatpush1.msra.mxu0 %v273
        %293 = vmatprep.subr.mxu0 0.0
        %294 = vmatpush1.msra.mxu0 0.0
        %295 = vmatprep.subr.mxu0 0.0
        %296 = vmatpush1.msra.mxu0 0.0
        %297 = vmatprep.subr.mxu0 0.0
        %298 = vmatpush1.msra.mxu0 0.0
        %299 = vmatprep.subr.mxu0 0.0
        %300 = vmatpush1.msra.mxu0 0.0
        %301 = vmatprep.subr.mxu0 0.0
        %302 = vmatpush1.msra.mxu0 0.0
        %303 = vmatprep.subr.mxu0 0.0
        %304 = vmatpush1.msra.mxu0 0.0
        %305 = vmatprep.subr.mxu0 0.0
        %306 = vmatpush1.msra.mxu0 0.0
        %307 = vmatprep.subr.mxu0 0.0
        %308 = vmatpush1.msra.mxu0 0.0
        %309 = vmatprep.subr.mxu0 0.0
        %310 = vmatpush1.msra.mxu0 0.0
        %311 = vmatprep.subr.mxu0 0.0
        %312 = vmatpush1.msra.mxu0 0.0
        %313 = vmatprep.subr.mxu0 0.0
        %314 = vmatpush1.msra.mxu0 0.0
        %315 = vmatprep.subr.mxu0 0.0
        %316 = vmatpush1.msra.mxu0 0.0
        %317 = vmatprep.subr.mxu0 0.0
        %318 = vmatpush1.msra.mxu0 0.0
        %319 = vmatprep.subr.mxu0 0.0
        %320 = vmatpush1.msra.mxu0 0.0
        %321 = vmatprep.subr.mxu0 0.0
        %322 = vmatpush1.msra.mxu0 0.0
        %323 = vmatprep.subr.mxu0 0.0
        %324 = vmatpush1.msra.mxu0 0.0
        %325 = vmatprep.subr.mxu0 0.0
        %326 = vmatpush1.msra.mxu0 0.0
        %327 = vmatprep.subr.mxu0 0.0
        %328 = vmatpush1.msra.mxu0 0.0
        %329 = vmatprep.subr.mxu0 0.0
        %330 = vmatpush1.msra.mxu0 0.0
        %331 = vmatprep.subr.mxu0 0.0
        %332 = vmatpush1.msra.mxu0 0.0
        %333 = vmatprep.subr.mxu0 0.0
        %334 = vmatpush1.msra.mxu0 0.0
        %335 = vmatprep.subr.mxu0 0.0
        %336 = vmatpush1.msra.mxu0 0.0
        %337 = vmatprep.subr.mxu0 0.0
        %338 = vmatpush1.msra.mxu0 0.0
        %339 = vmatprep.subr.mxu0 0.0
        %340 = vmatpush1.msra.mxu0 0.0
        %341 = vmatprep.subr.mxu0 0.0
        %342 = vmatpush1.msra.mxu0 0.0
        %343 = vmatprep.subr.mxu0 0.0
        %344 = vmatpush1.msra.mxu0 0.0
        %345 = vmatprep.subr.mxu0 0.0
        %346 = vmatpush1.msra.mxu0 0.0
        %347 = vmatprep.subr.mxu0 0.0
        %348 = vmatpush1.msra.mxu0 0.0
        %349 = vmatprep.mubr.f32.mxu0 0.0
        %350 = vmatmul.mubr.f32.gmra.mrb[0].mxu0 %v283
        %v351 = vpop.f32.mrb[0].mxu0
        %v352 = vadd.f32 %v279, %v351
        %v353 = vpop.f32.mrb[0].mxu0
        %354 = vdwg.mxu0
        %356 = vrot.lane.b32.xlu0 %v352, 96
        %v357 = vpop.permute.xlu0 %356
        %vm358 = vcmask 64512
        %v359 = vsel %vm358, %v352, 0
        %v361 = vsel %vm358, %v357, 0
        %363 = vmatprep.subr.mxu0 0.0
        %364 = vmatpush1.xpose.msra.mxu0 %v361
        %365 = vmatprep.subr.mxu0 0.0
        %366 = vmatpush1.xpose.msra.mxu0 0.0
        %367 = vmatprep.subr.mxu0 0.0
        %368 = vmatpush1.xpose.msra.mxu0 0.0
        %369 = vmatprep.subr.mxu0 0.0
        %370 = vmatpush1.xpose.msra.mxu0 0.0
        %371 = vmatprep.subr.mxu0 0.0
        %372 = vmatpush1.xpose.msra.mxu0 0.0
        %373 = vmatprep.subr.mxu0 0.0
        %374 = vmatpush1.xpose.msra.mxu0 0.0
        %375 = vmatprep.subr.mxu0 0.0
        %376 = vmatpush1.xpose.msra.mxu0 0.0
        %377 = vmatprep.subr.mxu0 0.0
        %378 = vmatpush1.xpose.msra.mxu0 0.0
        %379 = vmatprep.subr.mxu0 0.0
        %380 = vmatpush1.xpose.msra.mxu0 0.0
        %381 = vmatprep.subr.mxu0 0.0
        %382 = vmatpush1.xpose.msra.mxu0 0.0
        %383 = vmatprep.subr.mxu0 0.0
        %384 = vmatpush1.xpose.msra.mxu0 0.0
        %385 = vmatprep.subr.mxu0 0.0
        %386 = vmatpush1.xpose.msra.mxu0 0.0
        %387 = vmatprep.subr.mxu0 0.0
        %388 = vmatpush1.xpose.msra.mxu0 0.0
        %389 = vmatprep.subr.mxu0 0.0
        %390 = vmatpush1.xpose.msra.mxu0 0.0
        %391 = vmatprep.subr.mxu0 0.0
        %392 = vmatpush1.xpose.msra.mxu0 0.0
        %393 = vmatprep.subr.mxu0 0.0
        %394 = vmatpush1.xpose.msra.mxu0 0.0
        %395 = vmatprep.subr.mxu0 0.0
        %396 = vmatpush1.xpose.msra.mxu0 0.0
        %397 = vmatprep.subr.mxu0 0.0
        %398 = vmatpush1.xpose.msra.mxu0 0.0
        %399 = vmatprep.subr.mxu0 0.0
        %400 = vmatpush1.xpose.msra.mxu0 0.0
        %401 = vmatprep.subr.mxu0 0.0
        %402 = vmatpush1.xpose.msra.mxu0 0.0
        %403 = vmatprep.subr.mxu0 0.0
        %404 = vmatpush1.xpose.msra.mxu0 0.0
        %405 = vmatprep.subr.mxu0 0.0
        %406 = vmatpush1.xpose.msra.mxu0 0.0
        %407 = vmatprep.subr.mxu0 0.0
        %408 = vmatpush1.xpose.msra.mxu0 0.0
        %409 = vmatprep.subr.mxu0 0.0
        %410 = vmatpush1.xpose.msra.mxu0 0.0
        %411 = vmatprep.subr.mxu0 0.0
        %412 = vmatpush1.xpose.msra.mxu0 0.0
        %413 = vmatprep.subr.mxu0 0.0
        %414 = vmatpush1.xpose.msra.mxu0 0.0
        %415 = vmatprep.subr.mxu0 0.0
        %416 = vmatpush1.xpose.msra.mxu0 0.0
        %417 = vmatprep.subr.mxu0 0.0
        %418 = vmatpush1.xpose.msra.mxu0 0.0
        %419 = vmatprep.subr.mxu0 0.0
        %420 = vmatpush1.xpose.msra.mxu0 0.0
        %421 = vmatprep.subr.mxu0 0.0
        %422 = vmatpush1.xpose.msra.mxu0 0.0
        %423 = vmatprep.subr.mxu0 0.0
        %424 = vmatpush1.xpose.msra.mxu0 0.0
        %425 = vmatprep.subr.mxu0 0.0
        %426 = vmatpush1.xpose.msra.mxu0 0.0
        %427 = vmatprep.mubr.f32.mxu0 0.0
        %428 = vmatmul.mubr.f32.gmra.mrb[0].mxu0 %v359
        %v429 = vpop.f32.mrb[0].mxu0
        %v430 = vadd.f32 0.0, %v429
        %v431 = vpop.f32.mrb[0].mxu0
        %432 = vdwg.mxu0
        %v433 = vpow.f32 %v430, 0.35355338
        %434 = vst.msk [vmem:[#allocation2] sm:$0xff] %vm358, %v433
        %435 = vrot.lane.b32.xlu0 %v352, 120
        %v436 = vpop.permute.xlu0 %435
        %437 = vrot.lane.b32.xlu0 %v352, 88
        %v438 = vpop.permute.xlu0 %437
        %v439 = vsel %vm358, %v436, 0
        %v441 = vsel %vm358, %v438, 0
        %443 = vmatprep.subr.mxu0 0.0
        %444 = vmatpush1.xpose.msra.mxu0 %v441
        %445 = vmatprep.subr.mxu0 0.0
        %446 = vmatpush1.xpose.msra.mxu0 0.0
        %447 = vmatprep.subr.mxu0 0.0
        %448 = vmatpush1.xpose.msra.mxu0 0.0
        %449 = vmatprep.subr.mxu0 0.0
        %450 = vmatpush1.xpose.msra.mxu0 0.0
        %451 = vmatprep.subr.mxu0 0.0
        %452 = vmatpush1.xpose.msra.mxu0 0.0
        %453 = vmatprep.subr.mxu0 0.0
        %454 = vmatpush1.xpose.msra.mxu0 0.0
        %455 = vmatprep.subr.mxu0 0.0
        %456 = vmatpush1.xpose.msra.mxu0 0.0
        %457 = vmatprep.subr.mxu0 0.0
        %458 = vmatpush1.xpose.msra.mxu0 0.0
        %459 = vmatprep.subr.mxu0 0.0
        %460 = vmatpush1.xpose.msra.mxu0 0.0
        %461 = vmatprep.subr.mxu0 0.0
        %462 = vmatpush1.xpose.msra.mxu0 0.0
        %463 = vmatprep.subr.mxu0 0.0
        %464 = vmatpush1.xpose.msra.mxu0 0.0
        %465 = vmatprep.subr.mxu0 0.0
        %466 = vmatpush1.xpose.msra.mxu0 0.0
        %467 = vmatprep.subr.mxu0 0.0
        %468 = vmatpush1.xpose.msra.mxu0 0.0
        %469 = vmatprep.subr.mxu0 0.0
        %470 = vmatpush1.xpose.msra.mxu0 0.0
        %471 = vmatprep.subr.mxu0 0.0
        %472 = vmatpush1.xpose.msra.mxu0 0.0
        %473 = vmatprep.subr.mxu0 0.0
        %474 = vmatpush1.xpose.msra.mxu0 0.0
        %475 = vmatprep.subr.mxu0 0.0
        %476 = vmatpush1.xpose.msra.mxu0 0.0
        %477 = vmatprep.subr.mxu0 0.0
        %478 = vmatpush1.xpose.msra.mxu0 0.0
        %479 = vmatprep.subr.mxu0 0.0
        %480 = vmatpush1.xpose.msra.mxu0 0.0
        %481 = vmatprep.subr.mxu0 0.0
        %482 = vmatpush1.xpose.msra.mxu0 0.0
        %483 = vmatprep.subr.mxu0 0.0
        %484 = vmatpush1.xpose.msra.mxu0 0.0
        %485 = vmatprep.subr.mxu0 0.0
        %486 = vmatpush1.xpose.msra.mxu0 0.0
        %487 = vmatprep.subr.mxu0 0.0
        %488 = vmatpush1.xpose.msra.mxu0 0.0
        %489 = vmatprep.subr.mxu0 0.0
        %490 = vmatpush1.xpose.msra.mxu0 0.0
        %491 = vmatprep.subr.mxu0 0.0
        %492 = vmatpush1.xpose.msra.mxu0 0.0
        %493 = vmatprep.subr.mxu0 0.0
        %494 = vmatpush1.xpose.msra.mxu0 0.0
        %495 = vmatprep.subr.mxu0 0.0
        %496 = vmatpush1.xpose.msra.mxu0 0.0
        %497 = vmatprep.subr.mxu0 0.0
        %498 = vmatpush1.xpose.msra.mxu0 0.0
        %499 = vmatprep.subr.mxu0 0.0
        %500 = vmatpush1.xpose.msra.mxu0 0.0
        %501 = vmatprep.subr.mxu0 0.0
        %502 = vmatpush1.xpose.msra.mxu0 0.0
        %503 = vmatprep.subr.mxu0 0.0
        %504 = vmatpush1.xpose.msra.mxu0 0.0
        %505 = vmatprep.subr.mxu0 0.0
        %506 = vmatpush1.xpose.msra.mxu0 0.0
        %507 = vmatprep.mubr.f32.mxu0 0.0
        %508 = vmatmul.mubr.f32.gmra.mrb[0].mxu0 %v439
        %v509 = vpop.f32.mrb[0].mxu0
        %v510 = vadd.f32 0.0, %v509
        %v511 = vpop.f32.mrb[0].mxu0
        %512 = vdwg.mxu0
        %v513 = vpow.f32 %v510, 0.35355338
        %s514 = scalar_lea.vmem [#allocation2], 8
        %515 = vst.msk [vmem:[%s514] sm:$0xff] %vm358, %v513
        %516 = vrot.lane.b32.xlu0 %v352, 112
        %v517 = vpop.permute.xlu0 %516
        %518 = vrot.lane.b32.xlu0 %v352, 80
        %v519 = vpop.permute.xlu0 %518
        %v520 = vsel %vm358, %v517, 0
        %v522 = vsel %vm358, %v519, 0
        %524 = vmatprep.subr.mxu0 0.0
        %525 = vmatpush1.xpose.msra.mxu0 %v522
        %526 = vmatprep.subr.mxu0 0.0
        %527 = vmatpush1.xpose.msra.mxu0 0.0
        %528 = vmatprep.subr.mxu0 0.0
        %529 = vmatpush1.xpose.msra.mxu0 0.0
        %530 = vmatprep.subr.mxu0 0.0
        %531 = vmatpush1.xpose.msra.mxu0 0.0
        %532 = vmatprep.subr.mxu0 0.0
        %533 = vmatpush1.xpose.msra.mxu0 0.0
        %534 = vmatprep.subr.mxu0 0.0
        %535 = vmatpush1.xpose.msra.mxu0 0.0
        %536 = vmatprep.subr.mxu0 0.0
        %537 = vmatpush1.xpose.msra.mxu0 0.0
        %538 = vmatprep.subr.mxu0 0.0
        %539 = vmatpush1.xpose.msra.mxu0 0.0
        %540 = vmatprep.subr.mxu0 0.0
        %541 = vmatpush1.xpose.msra.mxu0 0.0
        %542 = vmatprep.subr.mxu0 0.0
        %543 = vmatpush1.xpose.msra.mxu0 0.0
        %544 = vmatprep.subr.mxu0 0.0
        %545 = vmatpush1.xpose.msra.mxu0 0.0
        %546 = vmatprep.subr.mxu0 0.0
        %547 = vmatpush1.xpose.msra.mxu0 0.0
        %548 = vmatprep.subr.mxu0 0.0
        %549 = vmatpush1.xpose.msra.mxu0 0.0
        %550 = vmatprep.subr.mxu0 0.0
        %551 = vmatpush1.xpose.msra.mxu0 0.0
        %552 = vmatprep.subr.mxu0 0.0
        %553 = vmatpush1.xpose.msra.mxu0 0.0
        %554 = vmatprep.subr.mxu0 0.0
        %555 = vmatpush1.xpose.msra.mxu0 0.0
        %556 = vmatprep.subr.mxu0 0.0
        %557 = vmatpush1.xpose.msra.mxu0 0.0
        %558 = vmatprep.subr.mxu0 0.0
        %559 = vmatpush1.xpose.msra.mxu0 0.0
        %560 = vmatprep.subr.mxu0 0.0
        %561 = vmatpush1.xpose.msra.mxu0 0.0
        %562 = vmatprep.subr.mxu0 0.0
        %563 = vmatpush1.xpose.msra.mxu0 0.0
        %564 = vmatprep.subr.mxu0 0.0
        %565 = vmatpush1.xpose.msra.mxu0 0.0
        %566 = vmatprep.subr.mxu0 0.0
        %567 = vmatpush1.xpose.msra.mxu0 0.0
        %568 = vmatprep.subr.mxu0 0.0
        %569 = vmatpush1.xpose.msra.mxu0 0.0
        %570 = vmatprep.subr.mxu0 0.0
        %571 = vmatpush1.xpose.msra.mxu0 0.0
        %572 = vmatprep.subr.mxu0 0.0
        %573 = vmatpush1.xpose.msra.mxu0 0.0
        %574 = vmatprep.subr.mxu0 0.0
        %575 = vmatpush1.xpose.msra.mxu0 0.0
        %576 = vmatprep.subr.mxu0 0.0
        %577 = vmatpush1.xpose.msra.mxu0 0.0
        %578 = vmatprep.subr.mxu0 0.0
        %579 = vmatpush1.xpose.msra.mxu0 0.0
        %580 = vmatprep.subr.mxu0 0.0
        %581 = vmatpush1.xpose.msra.mxu0 0.0
        %582 = vmatprep.subr.mxu0 0.0
        %583 = vmatpush1.xpose.msra.mxu0 0.0
        %584 = vmatprep.subr.mxu0 0.0
        %585 = vmatpush1.xpose.msra.mxu0 0.0
        %586 = vmatprep.subr.mxu0 0.0
        %587 = vmatpush1.xpose.msra.mxu0 0.0
        %588 = vmatprep.mubr.f32.mxu0 0.0
        %589 = vmatmul.mubr.f32.gmra.mrb[0].mxu0 %v520
        %v590 = vpop.f32.mrb[0].mxu0
        %v591 = vadd.f32 0.0, %v590
        %v592 = vpop.f32.mrb[0].mxu0
        %593 = vdwg.mxu0
        %v594 = vpow.f32 %v591, 0.35355338
        %s595 = scalar_lea.vmem [#allocation2], 16
        %596 = vst.msk [vmem:[%s595] sm:$0xff] %vm358, %v594
        %597 = vrot.lane.b32.xlu0 %v352, 104
        %v598 = vpop.permute.xlu0 %597
        %599 = vrot.lane.b32.xlu0 %v352, 72
        %v600 = vpop.permute.xlu0 %599
        %v601 = vsel %vm358, %v598, 0
        %v603 = vsel %vm358, %v600, 0
        %605 = vmatprep.subr.mxu0 0.0
        %606 = vmatpush1.xpose.msra.mxu0 %v603
        %607 = vmatprep.subr.mxu0 0.0
        %608 = vmatpush1.xpose.msra.mxu0 0.0
        %609 = vmatprep.subr.mxu0 0.0
        %610 = vmatpush1.xpose.msra.mxu0 0.0
        %611 = vmatprep.subr.mxu0 0.0
        %612 = vmatpush1.xpose.msra.mxu0 0.0
        %613 = vmatprep.subr.mxu0 0.0
        %614 = vmatpush1.xpose.msra.mxu0 0.0
        %615 = vmatprep.subr.mxu0 0.0
        %616 = vmatpush1.xpose.msra.mxu0 0.0
        %617 = vmatprep.subr.mxu0 0.0
        %618 = vmatpush1.xpose.msra.mxu0 0.0
        %619 = vmatprep.subr.mxu0 0.0
        %620 = vmatpush1.xpose.msra.mxu0 0.0
        %621 = vmatprep.subr.mxu0 0.0
        %622 = vmatpush1.xpose.msra.mxu0 0.0
        %623 = vmatprep.subr.mxu0 0.0
        %624 = vmatpush1.xpose.msra.mxu0 0.0
        %625 = vmatprep.subr.mxu0 0.0
        %626 = vmatpush1.xpose.msra.mxu0 0.0
        %627 = vmatprep.subr.mxu0 0.0
        %628 = vmatpush1.xpose.msra.mxu0 0.0
        %629 = vmatprep.subr.mxu0 0.0
        %630 = vmatpush1.xpose.msra.mxu0 0.0
        %631 = vmatprep.subr.mxu0 0.0
        %632 = vmatpush1.xpose.msra.mxu0 0.0
        %633 = vmatprep.subr.mxu0 0.0
        %634 = vmatpush1.xpose.msra.mxu0 0.0
        %635 = vmatprep.subr.mxu0 0.0
        %636 = vmatpush1.xpose.msra.mxu0 0.0
        %637 = vmatprep.subr.mxu0 0.0
        %638 = vmatpush1.xpose.msra.mxu0 0.0
        %639 = vmatprep.subr.mxu0 0.0
        %640 = vmatpush1.xpose.msra.mxu0 0.0
        %641 = vmatprep.subr.mxu0 0.0
        %642 = vmatpush1.xpose.msra.mxu0 0.0
        %643 = vmatprep.subr.mxu0 0.0
        %644 = vmatpush1.xpose.msra.mxu0 0.0
        %645 = vmatprep.subr.mxu0 0.0
        %646 = vmatpush1.xpose.msra.mxu0 0.0
        %647 = vmatprep.subr.mxu0 0.0
        %648 = vmatpush1.xpose.msra.mxu0 0.0
        %649 = vmatprep.subr.mxu0 0.0
        %650 = vmatpush1.xpose.msra.mxu0 0.0
        %651 = vmatprep.subr.mxu0 0.0
        %652 = vmatpush1.xpose.msra.mxu0 0.0
        %653 = vmatprep.subr.mxu0 0.0
        %654 = vmatpush1.xpose.msra.mxu0 0.0
        %655 = vmatprep.subr.mxu0 0.0
        %656 = vmatpush1.xpose.msra.mxu0 0.0
        %657 = vmatprep.subr.mxu0 0.0
        %658 = vmatpush1.xpose.msra.mxu0 0.0
        %659 = vmatprep.subr.mxu0 0.0
        %660 = vmatpush1.xpose.msra.mxu0 0.0
        %661 = vmatprep.subr.mxu0 0.0
        %662 = vmatpush1.xpose.msra.mxu0 0.0
        %663 = vmatprep.subr.mxu0 0.0
        %664 = vmatpush1.xpose.msra.mxu0 0.0
        %665 = vmatprep.subr.mxu0 0.0
        %666 = vmatpush1.xpose.msra.mxu0 0.0
        %667 = vmatprep.subr.mxu0 0.0
        %668 = vmatpush1.xpose.msra.mxu0 0.0
        %669 = vmatprep.mubr.f32.mxu0 0.0
        %670 = vmatmul.mubr.f32.gmra.mrb[0].mxu0 %v601
        %v671 = vpop.f32.mrb[0].mxu0
        %v672 = vadd.f32 0.0, %v671
        %v673 = vpop.f32.mrb[0].mxu0
        %674 = vdwg.mxu0
        %v675 = vpow.f32 %v672, 0.35355338
        %s676 = scalar_lea.vmem [#allocation2], 24
        %677 = vst.msk [vmem:[%s676] sm:$0xff] %vm358, %v675
        %v678 = vld [vmem:[#allocation2] sm:$0xff]
        %v679 = vld [vmem:[#allocation2 + $0x8] sm:$0xff]
        %v680 = vld [vmem:[#allocation2 + $0x10] sm:$0xff]
        %v681 = vld [vmem:[#allocation2 + $0x18] sm:$0xff]
        %v682 = vsel %vm358, %v678, -inf
        %v683 = vsel %vm358, %v679, -inf
        %v684 = vsel %vm358, %v680, -inf
        %v685 = vsel %vm358, %v681, -inf
        %v686 = vmax.f32 %v682, %v683
        %v687 = vmax.f32 %v684, %v685
        %v688 = vmax.f32 %v686, %v687
        %v689 = vsub.f32 %v678, %v688
        %v690 = vsub.f32 %v679, %v688
        %v691 = vsub.f32 %v680, %v688
        %v692 = vsub.f32 %v681, %v688
        %v693 = vmul.f32 %v689, 1.442695
        %v694 = vpow.pop %v693
        %v695 = vmul.f32 %v690, 1.442695
        %v696 = vpow.pop %v695
        %v697 = vmul.f32 %v691, 1.442695
        %v698 = vpow.pop %v697
        %v699 = vmul.f32 %v692, 1.442695
        %v700 = vpow.pop %v699
        %v701 = vsel %vm358, %v694, 0.0
        %v702 = vsel %vm358, %v696, 0.0
        %v703 = vadd.f32 %v701, %v702
        %v704 = vsel %vm358, %v698, 0.0
        %v705 = vadd.f32 %v703, %v704
        %v706 = vsel %vm358, %v700, 0.0
        %v707 = vadd.f32 %v705, %v706
        %v708 = vrcp.pop %v707
        %v709 = vmul.f32 %v694, %v708
        %v710 = vmul.f32 %v696, %v708
        %v711 = vmul.f32 %v698, %v708
        %v712 = vmul.f32 %v700, %v708
        %713 = vrot.lane.b32.xlu0 %v352, 64
        %v714 = vpop.permute.xlu0 %713
        %v717 = vsel %vm358, %v709, 0
        %719 = vmatprep.subr.mxu0 0.0
        %720 = vmatpush1.msra.mxu0 %v714
        %721 = vmatprep.subr.mxu0 0.0
        %722 = vmatpush1.msra.mxu0 0.0
        %723 = vmatprep.subr.mxu0 0.0
        %724 = vmatpush1.msra.mxu0 0.0
        %725 = vmatprep.subr.mxu0 0.0
        %726 = vmatpush1.msra.mxu0 0.0
        %727 = vmatprep.subr.mxu0 0.0
        %728 = vmatpush1.msra.mxu0 0.0
        %729 = vmatprep.subr.mxu0 0.0
        %730 = vmatpush1.msra.mxu0 0.0
        %731 = vmatprep.subr.mxu0 0.0
        %732 = vmatpush1.msra.mxu0 0.0
        %733 = vmatprep.subr.mxu0 0.0
        %734 = vmatpush1.msra.mxu0 0.0
        %735 = vmatprep.subr.mxu0 0.0
        %736 = vmatpush1.msra.mxu0 0.0
        %737 = vmatprep.subr.mxu0 0.0
        %738 = vmatpush1.msra.mxu0 0.0
        %739 = vmatprep.subr.mxu0 0.0
        %740 = vmatpush1.msra.mxu0 0.0
        %741 = vmatprep.subr.mxu0 0.0
        %742 = vmatpush1.msra.mxu0 0.0
        %743 = vmatprep.subr.mxu0 0.0
        %744 = vmatpush1.msra.mxu0 0.0
        %745 = vmatprep.subr.mxu0 0.0
        %746 = vmatpush1.msra.mxu0 0.0
        %747 = vmatprep.subr.mxu0 0.0
        %748 = vmatpush1.msra.mxu0 0.0
        %749 = vmatprep.subr.mxu0 0.0
        %750 = vmatpush1.msra.mxu0 0.0
        %751 = vmatprep.subr.mxu0 0.0
        %752 = vmatpush1.msra.mxu0 0.0
        %753 = vmatprep.subr.mxu0 0.0
        %754 = vmatpush1.msra.mxu0 0.0
        %755 = vmatprep.subr.mxu0 0.0
        %756 = vmatpush1.msra.mxu0 0.0
        %757 = vmatprep.subr.mxu0 0.0
        %758 = vmatpush1.msra.mxu0 0.0
        %759 = vmatprep.subr.mxu0 0.0
        %760 = vmatpush1.msra.mxu0 0.0
        %761 = vmatprep.subr.mxu0 0.0
        %762 = vmatpush1.msra.mxu0 0.0
        %763 = vmatprep.subr.mxu0 0.0
        %764 = vmatpush1.msra.mxu0 0.0
        %765 = vmatprep.subr.mxu0 0.0
        %766 = vmatpush1.msra.mxu0 0.0
        %767 = vmatprep.subr.mxu0 0.0
        %768 = vmatpush1.msra.mxu0 0.0
        %769 = vmatprep.subr.mxu0 0.0
        %770 = vmatpush1.msra.mxu0 0.0
        %771 = vmatprep.subr.mxu0 0.0
        %772 = vmatpush1.msra.mxu0 0.0
        %773 = vmatprep.subr.mxu0 0.0
        %774 = vmatpush1.msra.mxu0 0.0
        %775 = vmatprep.subr.mxu0 0.0
        %776 = vmatpush1.msra.mxu0 0.0
        %777 = vmatprep.subr.mxu0 0.0
        %778 = vmatpush1.msra.mxu0 0.0
        %779 = vmatprep.subr.mxu0 0.0
        %780 = vmatpush1.msra.mxu0 0.0
        %781 = vmatprep.subr.mxu0 0.0
        %782 = vmatpush1.msra.mxu0 0.0
        %783 = vmatprep.mubr.f32.mxu0 0.0
        %784 = vmatmul.mubr.f32.gmra.mrb[0].mxu0 %v717
        %v785 = vpop.f32.mrb[0].mxu0
        %v786 = vadd.f32 0.0, %v785
        %v787 = vpop.f32.mrb[0].mxu0
        %788 = vdwg.mxu0
        %789 = vst.msk [vmem:[#allocation3] sm:$0xff] %vm358, %v786
        %790 = vrot.lane.b32.xlu0 %v352, 56
        %v791 = vpop.permute.xlu0 %790
        %v794 = vsel %vm358, %v710, 0
        %796 = vmatprep.subr.mxu0 0.0
        %797 = vmatpush1.msra.mxu0 %v791
        %798 = vmatprep.subr.mxu0 0.0
        %799 = vmatpush1.msra.mxu0 0.0
        %800 = vmatprep.subr.mxu0 0.0
        %801 = vmatpush1.msra.mxu0 0.0
        %802 = vmatprep.subr.mxu0 0.0
        %803 = vmatpush1.msra.mxu0 0.0
        %804 = vmatprep.subr.mxu0 0.0
        %805 = vmatpush1.msra.mxu0 0.0
        %806 = vmatprep.subr.mxu0 0.0
        %807 = vmatpush1.msra.mxu0 0.0
        %808 = vmatprep.subr.mxu0 0.0
        %809 = vmatpush1.msra.mxu0 0.0
        %810 = vmatprep.subr.mxu0 0.0
        %811 = vmatpush1.msra.mxu0 0.0
        %812 = vmatprep.subr.mxu0 0.0
        %813 = vmatpush1.msra.mxu0 0.0
        %814 = vmatprep.subr.mxu0 0.0
        %815 = vmatpush1.msra.mxu0 0.0
        %816 = vmatprep.subr.mxu0 0.0
        %817 = vmatpush1.msra.mxu0 0.0
        %818 = vmatprep.subr.mxu0 0.0
        %819 = vmatpush1.msra.mxu0 0.0
        %820 = vmatprep.subr.mxu0 0.0
        %821 = vmatpush1.msra.mxu0 0.0
        %822 = vmatprep.subr.mxu0 0.0
        %823 = vmatpush1.msra.mxu0 0.0
        %824 = vmatprep.subr.mxu0 0.0
        %825 = vmatpush1.msra.mxu0 0.0
        %826 = vmatprep.subr.mxu0 0.0
        %827 = vmatpush1.msra.mxu0 0.0
        %828 = vmatprep.subr.mxu0 0.0
        %829 = vmatpush1.msra.mxu0 0.0
        %830 = vmatprep.subr.mxu0 0.0
        %831 = vmatpush1.msra.mxu0 0.0
        %832 = vmatprep.subr.mxu0 0.0
        %833 = vmatpush1.msra.mxu0 0.0
        %834 = vmatprep.subr.mxu0 0.0
        %835 = vmatpush1.msra.mxu0 0.0
        %836 = vmatprep.subr.mxu0 0.0
        %837 = vmatpush1.msra.mxu0 0.0
        %838 = vmatprep.subr.mxu0 0.0
        %839 = vmatpush1.msra.mxu0 0.0
        %840 = vmatprep.subr.mxu0 0.0
        %841 = vmatpush1.msra.mxu0 0.0
        %842 = vmatprep.subr.mxu0 0.0
        %843 = vmatpush1.msra.mxu0 0.0
        %844 = vmatprep.subr.mxu0 0.0
        %845 = vmatpush1.msra.mxu0 0.0
        %846 = vmatprep.subr.mxu0 0.0
        %847 = vmatpush1.msra.mxu0 0.0
        %848 = vmatprep.subr.mxu0 0.0
        %849 = vmatpush1.msra.mxu0 0.0
        %850 = vmatprep.subr.mxu0 0.0
        %851 = vmatpush1.msra.mxu0 0.0
        %852 = vmatprep.subr.mxu0 0.0
        %853 = vmatpush1.msra.mxu0 0.0
        %854 = vmatprep.subr.mxu0 0.0
        %855 = vmatpush1.msra.mxu0 0.0
        %856 = vmatprep.subr.mxu0 0.0
        %857 = vmatpush1.msra.mxu0 0.0
        %858 = vmatprep.subr.mxu0 0.0
        %859 = vmatpush1.msra.mxu0 0.0
        %860 = vmatprep.mubr.f32.mxu0 0.0
        %861 = vmatmul.mubr.f32.gmra.mrb[0].mxu0 %v794
        %v862 = vpop.f32.mrb[0].mxu0
        %v863 = vadd.f32 0.0, %v862
        %v864 = vpop.f32.mrb[0].mxu0
        %865 = vdwg.mxu0
        %867 = vrot.lane.b32.xlu0 %v863, 8
        %v868 = vpop.permute.xlu0 %867
        %vm870 = vcmask 130112
        %871 = vst.msk [vmem:[#allocation3] sm:$0xff] %vm870, %v868
        %872 = vrot.lane.b32.xlu0 %v352, 48
        %v873 = vpop.permute.xlu0 %872
        %v876 = vsel %vm358, %v711, 0
        %878 = vmatprep.subr.mxu0 0.0
        %879 = vmatpush1.msra.mxu0 %v873
        %880 = vmatprep.subr.mxu0 0.0
        %881 = vmatpush1.msra.mxu0 0.0
        %882 = vmatprep.subr.mxu0 0.0
        %883 = vmatpush1.msra.mxu0 0.0
        %884 = vmatprep.subr.mxu0 0.0
        %885 = vmatpush1.msra.mxu0 0.0
        %886 = vmatprep.subr.mxu0 0.0
        %887 = vmatpush1.msra.mxu0 0.0
        %888 = vmatprep.subr.mxu0 0.0
        %889 = vmatpush1.msra.mxu0 0.0
        %890 = vmatprep.subr.mxu0 0.0
        %891 = vmatpush1.msra.mxu0 0.0
        %892 = vmatprep.subr.mxu0 0.0
        %893 = vmatpush1.msra.mxu0 0.0
        %894 = vmatprep.subr.mxu0 0.0
        %895 = vmatpush1.msra.mxu0 0.0
        %896 = vmatprep.subr.mxu0 0.0
        %897 = vmatpush1.msra.mxu0 0.0
        %898 = vmatprep.subr.mxu0 0.0
        %899 = vmatpush1.msra.mxu0 0.0
        %900 = vmatprep.subr.mxu0 0.0
        %901 = vmatpush1.msra.mxu0 0.0
        %902 = vmatprep.subr.mxu0 0.0
        %903 = vmatpush1.msra.mxu0 0.0
        %904 = vmatprep.subr.mxu0 0.0
        %905 = vmatpush1.msra.mxu0 0.0
        %906 = vmatprep.subr.mxu0 0.0
        %907 = vmatpush1.msra.mxu0 0.0
        %908 = vmatprep.subr.mxu0 0.0
        %909 = vmatpush1.msra.mxu0 0.0
        %910 = vmatprep.subr.mxu0 0.0
        %911 = vmatpush1.msra.mxu0 0.0
        %912 = vmatprep.subr.mxu0 0.0
        %913 = vmatpush1.msra.mxu0 0.0
        %914 = vmatprep.subr.mxu0 0.0
        %915 = vmatpush1.msra.mxu0 0.0
        %916 = vmatprep.subr.mxu0 0.0
        %917 = vmatpush1.msra.mxu0 0.0
        %918 = vmatprep.subr.mxu0 0.0
        %919 = vmatpush1.msra.mxu0 0.0
        %920 = vmatprep.subr.mxu0 0.0
        %921 = vmatpush1.msra.mxu0 0.0
        %922 = vmatprep.subr.mxu0 0.0
        %923 = vmatpush1.msra.mxu0 0.0
        %924 = vmatprep.subr.mxu0 0.0
        %925 = vmatpush1.msra.mxu0 0.0
        %926 = vmatprep.subr.mxu0 0.0
        %927 = vmatpush1.msra.mxu0 0.0
        %928 = vmatprep.subr.mxu0 0.0
        %929 = vmatpush1.msra.mxu0 0.0
        %930 = vmatprep.subr.mxu0 0.0
        %931 = vmatpush1.msra.mxu0 0.0
        %932 = vmatprep.subr.mxu0 0.0
        %933 = vmatpush1.msra.mxu0 0.0
        %934 = vmatprep.subr.mxu0 0.0
        %935 = vmatpush1.msra.mxu0 0.0
        %936 = vmatprep.subr.mxu0 0.0
        %937 = vmatpush1.msra.mxu0 0.0
        %938 = vmatprep.subr.mxu0 0.0
        %939 = vmatpush1.msra.mxu0 0.0
        %940 = vmatprep.subr.mxu0 0.0
        %941 = vmatpush1.msra.mxu0 0.0
        %942 = vmatprep.mubr.f32.mxu0 0.0
        %943 = vmatmul.mubr.f32.gmra.mrb[0].mxu0 %v876
        %v944 = vpop.f32.mrb[0].mxu0
        %v945 = vadd.f32 0.0, %v944
        %v946 = vpop.f32.mrb[0].mxu0
        %947 = vdwg.mxu0
        %949 = vrot.lane.b32.xlu0 %v945, 16
        %v950 = vpop.permute.xlu0 %949
        %vm952 = vcmask 195712
        %953 = vst.msk [vmem:[#allocation3] sm:$0xff] %vm952, %v950
        %954 = vrot.lane.b32.xlu0 %v352, 40
        %v955 = vpop.permute.xlu0 %954
        %v958 = vsel %vm358, %v712, 0
        %960 = vmatprep.subr.mxu0 0.0
        %961 = vmatpush1.msra.mxu0 %v955
        %962 = vmatprep.subr.mxu0 0.0
        %963 = vmatpush1.msra.mxu0 0.0
        %964 = vmatprep.subr.mxu0 0.0
        %965 = vmatpush1.msra.mxu0 0.0
        %966 = vmatprep.subr.mxu0 0.0
        %967 = vmatpush1.msra.mxu0 0.0
        %968 = vmatprep.subr.mxu0 0.0
        %969 = vmatpush1.msra.mxu0 0.0
        %970 = vmatprep.subr.mxu0 0.0
        %971 = vmatpush1.msra.mxu0 0.0
        %972 = vmatprep.subr.mxu0 0.0
        %973 = vmatpush1.msra.mxu0 0.0
        %974 = vmatprep.subr.mxu0 0.0
        %975 = vmatpush1.msra.mxu0 0.0
        %976 = vmatprep.subr.mxu0 0.0
        %977 = vmatpush1.msra.mxu0 0.0
        %978 = vmatprep.subr.mxu0 0.0
        %979 = vmatpush1.msra.mxu0 0.0
        %980 = vmatprep.subr.mxu0 0.0
        %981 = vmatpush1.msra.mxu0 0.0
        %982 = vmatprep.subr.mxu0 0.0
        %983 = vmatpush1.msra.mxu0 0.0
        %984 = vmatprep.subr.mxu0 0.0
        %985 = vmatpush1.msra.mxu0 0.0
        %986 = vmatprep.subr.mxu0 0.0
        %987 = vmatpush1.msra.mxu0 0.0
        %988 = vmatprep.subr.mxu0 0.0
        %989 = vmatpush1.msra.mxu0 0.0
        %990 = vmatprep.subr.mxu0 0.0
        %991 = vmatpush1.msra.mxu0 0.0
        %992 = vmatprep.subr.mxu0 0.0
        %993 = vmatpush1.msra.mxu0 0.0
        %994 = vmatprep.subr.mxu0 0.0
        %995 = vmatpush1.msra.mxu0 0.0
        %996 = vmatprep.subr.mxu0 0.0
        %997 = vmatpush1.msra.mxu0 0.0
        %998 = vmatprep.subr.mxu0 0.0
        %999 = vmatpush1.msra.mxu0 0.0
        %1000 = vmatprep.subr.mxu0 0.0
        %1001 = vmatpush1.msra.mxu0 0.0
        %1002 = vmatprep.subr.mxu0 0.0
        %1003 = vmatpush1.msra.mxu0 0.0
        %1004 = vmatprep.subr.mxu0 0.0
        %1005 = vmatpush1.msra.mxu0 0.0
        %1006 = vmatprep.subr.mxu0 0.0
        %1007 = vmatpush1.msra.mxu0 0.0
        %1008 = vmatprep.subr.mxu0 0.0
        %1009 = vmatpush1.msra.mxu0 0.0
        %1010 = vmatprep.subr.mxu0 0.0
        %1011 = vmatpush1.msra.mxu0 0.0
        %1012 = vmatprep.subr.mxu0 0.0
        %1013 = vmatpush1.msra.mxu0 0.0
        %1014 = vmatprep.subr.mxu0 0.0
        %1015 = vmatpush1.msra.mxu0 0.0
        %1016 = vmatprep.subr.mxu0 0.0
        %1017 = vmatpush1.msra.mxu0 0.0
        %1018 = vmatprep.subr.mxu0 0.0
        %1019 = vmatpush1.msra.mxu0 0.0
        %1020 = vmatprep.subr.mxu0 0.0
        %1021 = vmatpush1.msra.mxu0 0.0
        %1022 = vmatprep.subr.mxu0 0.0
        %1023 = vmatpush1.msra.mxu0 0.0
        %1024 = vmatprep.mubr.f32.mxu0 0.0
        %1025 = vmatmul.mubr.f32.gmra.mrb[0].mxu0 %v958
        %v1026 = vpop.f32.mrb[0].mxu0
        %v1027 = vadd.f32 0.0, %v1026
        %v1028 = vpop.f32.mrb[0].mxu0
        %1029 = vdwg.mxu0
        %1031 = vrot.lane.b32.xlu0 %v1027, 24
        %v1032 = vpop.permute.xlu0 %1031
        %vm1034 = vcmask 261312
        %1035 = vst.msk [vmem:[#allocation3] sm:$0xff] %vm1034, %v1032
        %v1036 = vld [vmem:[#allocation3] sm:$0xff]
        %v1037 = vld [vmem:[#allocation9] sm:$0xff]
        %v1038 = vld [vmem:[#allocation9 + $0x8] sm:$0xff]
        %v1039 = vld [vmem:[#allocation9 + $0x10] sm:$0xff]
        %v1040 = vld [vmem:[#allocation9 + $0x18] sm:$0xff]
        %v1041 = vld [vmem:[%s4] sm:$0x1]
        %v1043 = vlaneseq
        %v1044 = vshrl.u32 %v1043, 7
        %v1045 = vsub.s32 0, %v1044
        %v1046 = vrot.slane %v1041, %v1045
        %v1049 = vsel %vm281, %v1036, 0
        %1051 = vmatprep.subr.mxu0 0.0
        %1052 = vmatpush1.msra.mxu0 %v1037
        %1053 = vmatprep.subr.mxu0 0.0
        %1054 = vmatpush1.msra.mxu0 %v1038
        %1055 = vmatprep.subr.mxu0 0.0
        %1056 = vmatpush1.msra.mxu0 %v1039
        %1057 = vmatprep.subr.mxu0 0.0
        %1058 = vmatpush1.msra.mxu0 %v1040
        %1059 = vmatprep.subr.mxu0 0.0
        %1060 = vmatpush1.msra.mxu0 0.0
        %1061 = vmatprep.subr.mxu0 0.0
        %1062 = vmatpush1.msra.mxu0 0.0
        %1063 = vmatprep.subr.mxu0 0.0
        %1064 = vmatpush1.msra.mxu0 0.0
        %1065 = vmatprep.subr.mxu0 0.0
        %1066 = vmatpush1.msra.mxu0 0.0
        %1067 = vmatprep.subr.mxu0 0.0
        %1068 = vmatpush1.msra.mxu0 0.0
        %1069 = vmatprep.subr.mxu0 0.0
        %1070 = vmatpush1.msra.mxu0 0.0
        %1071 = vmatprep.subr.mxu0 0.0
        %1072 = vmatpush1.msra.mxu0 0.0
        %1073 = vmatprep.subr.mxu0 0.0
        %1074 = vmatpush1.msra.mxu0 0.0
        %1075 = vmatprep.subr.mxu0 0.0
        %1076 = vmatpush1.msra.mxu0 0.0
        %1077 = vmatprep.subr.mxu0 0.0
        %1078 = vmatpush1.msra.mxu0 0.0
        %1079 = vmatprep.subr.mxu0 0.0
        %1080 = vmatpush1.msra.mxu0 0.0
        %1081 = vmatprep.subr.mxu0 0.0
        %1082 = vmatpush1.msra.mxu0 0.0
        %1083 = vmatprep.subr.mxu0 0.0
        %1084 = vmatpush1.msra.mxu0 0.0
        %1085 = vmatprep.subr.mxu0 0.0
        %1086 = vmatpush1.msra.mxu0 0.0
        %1087 = vmatprep.subr.mxu0 0.0
        %1088 = vmatpush1.msra.mxu0 0.0
        %1089 = vmatprep.subr.mxu0 0.0
        %1090 = vmatpush1.msra.mxu0 0.0
        %1091 = vmatprep.subr.mxu0 0.0
        %1092 = vmatpush1.msra.mxu0 0.0
        %1093 = vmatprep.subr.mxu0 0.0
        %1094 = vmatpush1.msra.mxu0 0.0
        %1095 = vmatprep.subr.mxu0 0.0
        %1096 = vmatpush1.msra.mxu0 0.0
        %1097 = vmatprep.subr.mxu0 0.0
        %1098 = vmatpush1.msra.mxu0 0.0
        %1099 = vmatprep.subr.mxu0 0.0
        %1100 = vmatpush1.msra.mxu0 0.0
        %1101 = vmatprep.subr.mxu0 0.0
        %1102 = vmatpush1.msra.mxu0 0.0
        %1103 = vmatprep.subr.mxu0 0.0
        %1104 = vmatpush1.msra.mxu0 0.0
        %1105 = vmatprep.subr.mxu0 0.0
        %1106 = vmatpush1.msra.mxu0 0.0
        %1107 = vmatprep.subr.mxu0 0.0
        %1108 = vmatpush1.msra.mxu0 0.0
        %1109 = vmatprep.subr.mxu0 0.0
        %1110 = vmatpush1.msra.mxu0 0.0
        %1111 = vmatprep.subr.mxu0 0.0
        %1112 = vmatpush1.msra.mxu0 0.0
        %1113 = vmatprep.subr.mxu0 0.0
        %1114 = vmatpush1.msra.mxu0 0.0
        %1115 = vmatprep.mubr.f32.mxu0 0.0
        %1116 = vmatmul.mubr.f32.gmra.mrb[0].mxu0 %v1049
        %v1117 = vpop.f32.mrb[0].mxu0
        %v1118 = vadd.f32 %v1046, %v1117
        %v1119 = vpop.f32.mrb[0].mxu0
        %1120 = vdwg.mxu0
        %1121 = vst.msk [vmem:[%s268] sm:$0xff] %vm281, %v1118
        %s1122 = sand.u32 %s141, 1
        %s1123 = scalar_lea.sflag [#allocation6], %s1122
        %s1124 = sand.u32 %s141, 1
        %s1125 = smul.addr %s1124, 8
        %s1126 = scalar_lea.vmem [#allocation10], %s1125
        // Predicated region
        $region53: #{tpu_custom_call.1} parent=39 // pred_check
          %p1127 = pneg %p151
        $region54: #{tpu_custom_call.1} parent=39 // pred_check_branch
          %1129 = sbr.rel (%p1127) target = $region56
        $region55: #{tpu_custom_call.1} parent=39 // pred_region
          %s1131 = ssub.s32 128, 128
          %1132 = vsyncadd %s1123, %s1131
          %s1133 = smul.addr %s23, 128
          %s1134 = scalar_lea.hbm %s5, %s1133
          %s1136 = sshll.u32 %s1126, 4
          %s1137 = int_to_ptr.vmem [resolvable:$true] %s1136
          %1139 = dma.vmem_to_hbm [thread:$0]  %s1137, 128, %s1134, %s1123
        $region56: #{tpu_custom_call.1} parent=39 // pred_fallthru
          _
      $region40: #{tpu_custom_call.1} parent=5 // pred_fallthru
        _
      %p1140 = scmp.le.s32.totalorder 2, %s18
      // Predicated region
      $region57: #{tpu_custom_call.1} parent=5 // pred_check
        %p1141 = pneg %p1140
      $region58: #{tpu_custom_call.1} parent=5 // pred_check_branch
        %1143 = sbr.rel (%p1141) target = $region60
      $region59: #{tpu_custom_call.1} parent=5 // pred_region
        %s1144 = ssub.s32 %s18, 2
        // Predicated region
        $region61: #{tpu_custom_call.1} parent=59 // pred_check
          %p1145 = pneg %p157
        $region62: #{tpu_custom_call.1} parent=59 // pred_check_branch
          %1147 = sbr.rel (%p1145) target = $region64
        $region63: #{tpu_custom_call.1} parent=59 // pred_region
          %s1148 = sand.u32 %s142, 1
          %s1149 = scalar_lea.sflag [#allocation6], %s1148
          %s1150 = sand.u32 %s142, 1
          %s1151 = smul.addr %s1150, 8
          %s1152 = scalar_lea.vmem [#allocation10], %s1151
          %1153 = dma.done %s1149, 128
        $region64: #{tpu_custom_call.1} parent=59 // pred_fallthru
          _
      $region60: #{tpu_custom_call.1} parent=5 // pred_fallthru
        _
    $region6: #{tpu_custom_call.1} parent=1 // loop_footer
      %s22 = sadd.s32 1, %s18
    $region7: #{tpu_custom_call.1} parent=1 // loop_footer_branch
      %17 = sbr.rel target = $region3
    $region8: #{tpu_custom_call.1} parent=1 // loop_exit
      _
    %1154 = vsyncpa [#allocation5], 1
    %s1155 = scalar_lea.sflag [#allocation5], 1
    %1156 = vsyncpa %s1155, 1
    %1157 = vsyncpa [#allocation8], 1
    %1158 = vsyncpa [#allocation6], 1
    %s1159 = scalar_lea.sflag [#allocation6], 1
    %1160 = vsyncpa %s1159, 1

</llo_original>
